<compile_context>
chip_gen: v5e
topology: v5e:2x2
jax: 0.10.0
libtpu: 0.0.40
codegen_flags: <defaults>
</compile_context>

<pallas_src>
import functools

import jax
import jax.numpy as jnp
import numpy as np
from jax.experimental import pallas as pl
from jax.experimental.pallas import tpu as pltpu


# ---------------------------------------------------------------------------
# Kernel 1: parallel precompute of all x-dependent matmuls (no recurrence).
#   pre = x @ [W_ih.T | W_b.T] + [0...0 | b_b + b_e]     (bf16 operands,
#                                                          f32 accum, bf16 store)
# Columns [0, 4H) feed the LSTM gates (scaled by alpha inside the recurrence,
# valid because alpha is a per-row scalar: (alpha*x)@W == alpha*(x@W));
# columns [4H, 5H) feed the attention score.
# ---------------------------------------------------------------------------
def precompute_kernel(x_ref, wx_ref, batt_ref, pre_ref):
    pre = jnp.dot(x_ref[...], wx_ref[...], preferred_element_type=jnp.float32)
    pre_ref[...] = (pre + batt_ref[...]).astype(pre_ref.dtype)


# ---------------------------------------------------------------------------
# Kernel 2: the serial recurrence.  One grid step processes tc timesteps.
# Single fused state matmul per step: [h|c] (B,2H) @ whc (2H,5H).
# ---------------------------------------------------------------------------
def att_recurrent_kernel(pre_ref, whc_ref, v_ref, blstm_ref, out_ref,
                         h_scr, c_scr):
    @pl.when(pl.program_id(0) == 0)
    def _():
        h_scr[...] = jnp.zeros_like(h_scr)
        c_scr[...] = jnp.zeros_like(c_scr)

    tc, _, h5 = pre_ref.shape
    hdim = h5 // 5
    h4 = 4 * hdim

    def step(s, carry):
        h, c = carry
        # One fused state matmul:
        #   hw = [h|c] @ [[W_hh.T | W_e_h.T], [0 | W_e_c.T]]  -> (B, 5H)
        hc = jnp.concatenate([h, c], axis=-1).astype(whc_ref.dtype)      # (B, 2H)
        hw = jnp.dot(hc, whc_ref[...], preferred_element_type=jnp.float32)

        pre = pre_ref[s].astype(jnp.float32)                             # (B, 5H)

        # ---- attention layer ----
        att_pre = hw[:, h4:] + pre[:, h4:]                               # (B, H)
        score = jnp.sum(jnp.tanh(att_pre) * v_ref[...],
                        axis=-1, keepdims=True)                          # (B, 1)
        score = score - jnp.max(score, axis=0, keepdims=True)            # softmax dim=0
        e = jnp.exp(score)
        alpha = e * pl.reciprocal(jnp.sum(e, axis=0, keepdims=True), approx=True)

        # ---- LSTM cell (gate order i, f, g, o as in nn.LSTMCell) ----
        gates = alpha * pre[:, :h4] + hw[:, :h4] + blstm_ref[...]        # (B, 4H)
        i_g = jax.nn.sigmoid(gates[:, 0 * hdim:1 * hdim])
        f_g = jax.nn.sigmoid(gates[:, 1 * hdim:2 * hdim])
        g_g = jnp.tanh(gates[:, 2 * hdim:3 * hdim])
        o_g = jax.nn.sigmoid(gates[:, 3 * hdim:4 * hdim])

        c_new = f_g * c + i_g * g_g
        h_new = o_g * jnp.tanh(c_new)
        out_ref[s] = h_new
        return h_new, c_new

    h, c = jax.lax.fori_loop(0, tc, step, (h_scr[...], c_scr[...]), unroll=True)
    h_scr[...] = h
    c_scr[...] = c


@functools.partial(jax.jit, static_argnames=("tc",))
def att_forward(x, W_b, b_b, W_e, b_e, v_b, W_ih, W_hh, b_ih, b_hh, *, tc=8):
    T, B, H = x.shape
    f32, bf16 = jnp.float32, jnp.bfloat16

    # ---- weight packing (plain-JAX glue, fused once under jit) ----
    # x-side fused weight: (H, 5H) = [W_ih.T | W_b.T]
    wx_fused = jnp.concatenate([W_ih.T, W_b.T], axis=1).astype(bf16)
    # bias broadcast over the full 5H lane width (zeros under the gate columns)
    batt5 = jnp.concatenate(
        [jnp.zeros((4 * H,), f32), (b_b + b_e).astype(f32)]).reshape(1, 5 * H)
    # state-side fused weight: (2H, 5H) = [[W_hh.T | W_e_h.T], [0 | W_e_c.T]]
    wh_top = jnp.concatenate([W_hh.T, W_e[:, :H].T], axis=1)             # (H, 5H)
    wh_bot = jnp.concatenate([jnp.zeros((H, 4 * H), W_e.dtype), W_e[:, H:].T],
                             axis=1)                                     # (H, 5H)
    whc_fused = jnp.concatenate([wh_top, wh_bot], axis=0).astype(bf16)   # (2H, 5H)
    blstm = (b_ih + b_hh).reshape(1, 4 * H).astype(f32)
    v = v_b.reshape(1, H).astype(f32)

    # Pad T up to a multiple of the time-chunk; the padded tail steps only write
    # output rows that are sliced off below, so they never affect real results.
    n_chunks = pl.cdiv(T, tc)
    t_pad = n_chunks * tc
    x_bf = x.astype(bf16)
    if t_pad != T:
        x_bf = jnp.pad(x_bf, ((0, t_pad - T), (0, 0), (0, 0)))

    const2d = lambda i: (0, 0)

    # ---- kernel 1: parallel (megacore-shardable) x precompute ----
    # Grid/block decoupled from tc: large M tiles for HBM-roofline DMA and
    # useful parallel sharding on v7x; pad rows so the block divides evenly.
    rows = t_pad * B
    block_m = min(512, rows)
    m_blocks = pl.cdiv(rows, block_m)
    rows_pad = m_blocks * block_m
    x2 = x_bf.reshape(rows, H)
    if rows_pad != rows:
        x2 = jnp.pad(x2, ((0, rows_pad - rows), (0, 0)))

    pre2 = pl.pallas_call(
        precompute_kernel,
        out_shape=jax.ShapeDtypeStruct((rows_pad, 5 * H), bf16),
        grid_spec=pltpu.PrefetchScalarGridSpec(
            num_scalar_prefetch=0,
            grid=(m_blocks,),
            in_specs=[
                pl.BlockSpec((block_m, H), lambda i: (i, 0)),   # x tile
                pl.BlockSpec((H, 5 * H), const2d),              # [W_ih.T | W_b.T]
                pl.BlockSpec((1, 5 * H), const2d),              # [0 | b_b + b_e]
            ],
            out_specs=pl.BlockSpec((block_m, 5 * H), lambda i: (i, 0))),
        compiler_params=pltpu.CompilerParams(
            dimension_semantics=("parallel",)),
    )(x2, wx_fused, batt5)
    pre = pre2[:rows].reshape(t_pad, B, 5 * H)

    # ---- kernel 2: sequential recurrence, tc timesteps per grid step ----
    out = pl.pallas_call(
        att_recurrent_kernel,
        out_shape=jax.ShapeDtypeStruct((t_pad, B, H), f32),
        grid_spec=pltpu.PrefetchScalarGridSpec(
            num_scalar_prefetch=0,
            grid=(n_chunks,),
            in_specs=[
                pl.BlockSpec((tc, B, 5 * H), lambda i: (i, 0, 0)),  # fused pre chunk
                pl.BlockSpec((2 * H, 5 * H), const2d),              # fused [h|c] weight
                pl.BlockSpec((1, H), const2d),                      # v_b
                pl.BlockSpec((1, 4 * H), const2d),                  # b_ih + b_hh
            ],
            out_specs=pl.BlockSpec((tc, B, H), lambda i: (i, 0, 0)),
            scratch_shapes=[
                pltpu.VMEM((B, H), f32),    # h state (persists across chunks)
                pltpu.VMEM((B, H), f32),    # c state
            ]),
        compiler_params=pltpu.CompilerParams(
            dimension_semantics=("arbitrary",)),    # sequential recurrence over T
    )(pre, whc_fused, v, blstm)

    return out[:T]


def att_reference(x, W_b, b_b, W_e, b_e, v_b, W_ih, W_hh, b_ih, b_hh,
                  matmul_dtype=jnp.float32):
    """Pure-JAX reference of the live part of the PyTorch forward.

    `matmul_dtype=jnp.bfloat16` mirrors the kernel's intentional bf16 MXU
    operands (f32 accumulation, f32 elementwise), so the comparison isolates
    implementation bugs from the chosen precision tradeoff.
    """
    T, B, H = x.shape
    md = matmul_dtype
    mm = lambda a, w_t: jnp.dot(a.astype(md), w_t.astype(md),
                                preferred_element_type=jnp.float32)
    h = jnp.zeros((B, H), jnp.float32)
    c = jnp.zeros((B, H), jnp.float32)
    outs = []
    for t in range(T):
        x_t = x[t]
        a = mm(h, W_e[:, :H].T) + mm(c, W_e[:, H:].T) + b_e
        b = mm(x_t, W_b.T) + b_b
        score = jnp.sum(jnp.tanh(a + b) * v_b, axis=-1, keepdims=True)   # (B, 1)
        alpha = jax.nn.softmax(score, axis=0)
        gates = alpha * mm(x_t, W_ih.T) + mm(h, W_hh.T) + b_ih + b_hh
        i_g = jax.nn.sigmoid(gates[:, 0 * H:1 * H])
        f_g = jax.nn.sigmoid(gates[:, 1 * H:2 * H])
        g_g = jnp.tanh(gates[:, 2 * H:3 * H])
        o_g = jax.nn.sigmoid(gates[:, 3 * H:4 * H])
        c = f_g * c + i_g * g_g
        h = o_g * jnp.tanh(c)
        outs.append(h)
    return jnp.stack(outs, axis=0)


if __name__ == "__main__":
    T, B, H = 8, 8, 32

    key = jax.random.PRNGKey(0)
    ks = jax.random.split(key, 10)

    # Deterministic synthetic parameters (shapes follow the nn.Module __init__).
    scale = 1.0 / np.sqrt(H)
    W_b = jax.random.normal(ks[0], (H, H), jnp.float32) * scale          # Linear(H, H).weight
    b_b = jax.random.normal(ks[1], (H,), jnp.float32) * scale
    W_e = jax.random.normal(ks[2], (H, 2 * H), jnp.float32) * scale      # Linear(2H, H).weight
    b_e = jax.random.normal(ks[3], (H,), jnp.float32) * scale
    v_b = jax.random.normal(ks[4], (1, H), jnp.float32) * scale          # v_b parameter
    W_ih = jax.random.normal(ks[5], (4 * H, H), jnp.float32) * scale     # LSTMCell.weight_ih
    W_hh = jax.random.normal(ks[6], (4 * H, H), jnp.float32) * scale     # LSTMCell.weight_hh
    b_ih = jax.random.normal(ks[7], (4 * H,), jnp.float32) * scale
    b_hh = jax.random.normal(ks[8], (4 * H,), jnp.float32) * scale

    x = jax.random.normal(ks[9], (T, B, H), jnp.float32)

    out = att_forward(x, W_b, b_b, W_e, b_e, v_b, W_ih, W_hh, b_ih, b_hh, tc=8)
    out = jax.block_until_ready(out)

    # Compare against a reference that uses the same bf16 MXU-operand cast
    # (tolerance sized for the bf16 operand + bf16 precompute-storage path).
    ref = att_reference(x, W_b, b_b, W_e, b_e, v_b, W_ih, W_hh, b_ih, b_hh,
                        matmul_dtype=jnp.bfloat16)
    ref = jax.block_until_ready(ref)

    np.testing.assert_allclose(np.asarray(out), np.asarray(ref), rtol=1e-2, atol=2e-2)
    print("KERNEL_OK")
</pallas_src>

<mosaic_0001>
module attributes {stable_mosaic.version = 11 : i64} {
  func.func @precompute_kernel(%arg0: i32, %arg1: memref<64x32xbf16, #tpu.memory_space<vmem>>, %arg2: memref<32x160xbf16, #tpu.memory_space<vmem>>, %arg3: memref<1x160xf32, #tpu.memory_space<vmem>>, %arg4: memref<64x160xbf16, #tpu.memory_space<vmem>>) attributes {dimension_semantics = [#tpu.dimension_semantics<parallel>], iteration_bounds = array<i64: 1>, scalar_prefetch = 0 : i64, scratch_operands = 0 : i64, tpu.core_type = #tpu.core_type<tc>, window_params = [{transform_indices = @transform_0, window_bounds = array<i64: 64, 32>}, {pipeline_mode = #tpu.pipeline_mode<synchronous>, transform_indices = @transform_1, window_bounds = array<i64: 32, 160>}, {pipeline_mode = #tpu.pipeline_mode<synchronous>, transform_indices = @transform_2, window_bounds = array<i64: 1, 160>}, {transform_indices = @transform_3, window_bounds = array<i64: 64, 160>}]} {
    %c0 = arith.constant 0 : index
    %c0_0 = arith.constant 0 : index
    %0 = vector.load %arg1[%c0, %c0_0] : memref<64x32xbf16, #tpu.memory_space<vmem>>, vector<64x32xbf16>
    %c0_1 = arith.constant 0 : index
    %c0_2 = arith.constant 0 : index
    %1 = vector.load %arg2[%c0_1, %c0_2] : memref<32x160xbf16, #tpu.memory_space<vmem>>, vector<32x160xbf16>
    %cst = arith.constant dense<0.000000e+00> : vector<64x160xf32>
    %2 = tpu.matmul %0, %1, %cst {dimension_numbers = #tpu.dot_dimension_numbers<[1], [0], [0], [1], [0, 0, 1, 1], [], []>} : vector<64x32xbf16>, vector<32x160xbf16>, vector<64x160xf32> -> vector<64x160xf32>
    %c0_3 = arith.constant 0 : index
    %c0_4 = arith.constant 0 : index
    %3 = vector.load %arg3[%c0_3, %c0_4] : memref<1x160xf32, #tpu.memory_space<vmem>>, vector<1x160xf32>
    %4 = vector.broadcast %3 : vector<1x160xf32> to vector<64x160xf32>
    %5 = arith.addf %2, %4 : vector<64x160xf32>
    %6 = arith.truncf %5 : vector<64x160xf32> to vector<64x160xbf16>
    %c0_5 = arith.constant 0 : index
    %c0_6 = arith.constant 0 : index
    %7 = vector.load %arg4[%c0_5, %c0_6] : memref<64x160xbf16, #tpu.memory_space<vmem>>, vector<64x160xbf16>
    tpu.vector_store %arg4[%c0_5, %c0_6], %6 {strides = array<i32>} : memref<64x160xbf16, #tpu.memory_space<vmem>>, vector<64x160xbf16>,
    return
  }
  func.func @transform_0(%arg0: i32) -> (i32, i32) {
    %c0_i32 = arith.constant 0 : i32
    %c0_i32_0 = arith.constant 0 : i32
    return %arg0, %c0_i32 : i32, i32
  }
  func.func @transform_1(%arg0: i32) -> (i32, i32) {
    %c0_i32 = arith.constant 0 : i32
    %c0_i32_0 = arith.constant 0 : i32
    %c0_i32_1 = arith.constant 0 : i32
    return %c0_i32, %c0_i32_0 : i32, i32
  }
  func.func @transform_2(%arg0: i32) -> (i32, i32) {
    %c0_i32 = arith.constant 0 : i32
    %c0_i32_0 = arith.constant 0 : i32
    %c0_i32_1 = arith.constant 0 : i32
    return %c0_i32, %c0_i32_0 : i32, i32
  }
  func.func @transform_3(%arg0: i32) -> (i32, i32) {
    %c0_i32 = arith.constant 0 : i32
    %c0_i32_0 = arith.constant 0 : i32
    return %arg0, %c0_i32 : i32, i32
  }
}

module attributes {stable_mosaic.version = 11 : i64} {
  func.func @att_recurrent_kernel(%arg0: i32, %arg1: memref<8x8x160xbf16, #tpu.memory_space<vmem>>, %arg2: memref<64x160xbf16, #tpu.memory_space<vmem>>, %arg3: memref<1x32xf32, #tpu.memory_space<vmem>>, %arg4: memref<1x128xf32, #tpu.memory_space<vmem>>, %arg5: memref<8x8x32xf32, #tpu.memory_space<vmem>>, %arg6: memref<8x32xf32, #tpu.memory_space<vmem>>, %arg7: memref<8x32xf32, #tpu.memory_space<vmem>>) attributes {dimension_semantics = [#tpu.dimension_semantics<arbitrary>], iteration_bounds = array<i64: 1>, scalar_prefetch = 0 : i64, scratch_operands = 2 : i64, tpu.core_type = #tpu.core_type<tc>, window_params = [{transform_indices = @transform_0, window_bounds = array<i64: 8, 8, 160>}, {pipeline_mode = #tpu.pipeline_mode<synchronous>, transform_indices = @transform_1, window_bounds = array<i64: 64, 160>}, {pipeline_mode = #tpu.pipeline_mode<synchronous>, transform_indices = @transform_2, window_bounds = array<i64: 1, 32>}, {pipeline_mode = #tpu.pipeline_mode<synchronous>, transform_indices = @transform_3, window_bounds = array<i64: 1, 128>}, {transform_indices = @transform_4, window_bounds = array<i64: 8, 8, 32>}]} {
    %c0_i32 = arith.constant 0 : i32
    %0 = arith.cmpi eq, %arg0, %c0_i32 : i32
    %1 = arith.extui %0 : i1 to i32
    %c0_i32_0 = arith.constant 0 : i32
    %2 = arith.cmpi ne, %1, %c0_i32_0 : i32
    scf.if %2 {
      %cst_144 = arith.constant 0.000000e+00 : f32
      %519 = vector.broadcast %cst_144 : f32 to vector<8x32xf32>
      %c0_145 = arith.constant 0 : index
      %c0_146 = arith.constant 0 : index
      %520 = vector.load %arg6[%c0_145, %c0_146] : memref<8x32xf32, #tpu.memory_space<vmem>>, vector<8x32xf32>
      tpu.vector_store %arg6[%c0_145, %c0_146], %519 {strides = array<i32>} : memref<8x32xf32, #tpu.memory_space<vmem>>, vector<8x32xf32>,
      %cst_147 = arith.constant 0.000000e+00 : f32
      %521 = vector.broadcast %cst_147 : f32 to vector<8x32xf32>
      %c0_148 = arith.constant 0 : index
      %c0_149 = arith.constant 0 : index
      %522 = vector.load %arg7[%c0_148, %c0_149] : memref<8x32xf32, #tpu.memory_space<vmem>>, vector<8x32xf32>
      tpu.vector_store %arg7[%c0_148, %c0_149], %521 {strides = array<i32>} : memref<8x32xf32, #tpu.memory_space<vmem>>, vector<8x32xf32>,
    } else {
    }
    %c0 = arith.constant 0 : index
    %c0_1 = arith.constant 0 : index
    %3 = vector.load %arg6[%c0, %c0_1] : memref<8x32xf32, #tpu.memory_space<vmem>>, vector<8x32xf32>
    %c0_2 = arith.constant 0 : index
    %c0_3 = arith.constant 0 : index
    %4 = vector.load %arg7[%c0_2, %c0_3] : memref<8x32xf32, #tpu.memory_space<vmem>>, vector<8x32xf32>
    %c0_i32_4 = arith.constant 0 : i32
    %5 = tpu.concatenate %3, %4 in 1 : vector<8x32xf32>, vector<8x32xf32> -> vector<8x64xf32>
    %6 = arith.truncf %5 : vector<8x64xf32> to vector<8x64xbf16>
    %c0_5 = arith.constant 0 : index
    %c0_6 = arith.constant 0 : index
    %7 = vector.load %arg2[%c0_5, %c0_6] : memref<64x160xbf16, #tpu.memory_space<vmem>>, vector<64x160xbf16>
    %cst = arith.constant dense<0.000000e+00> : vector<8x160xf32>
    %8 = tpu.matmul %6, %7, %cst {dimension_numbers = #tpu.dot_dimension_numbers<[1], [0], [0], [1], [0, 0, 1, 1], [], []>} : vector<8x64xbf16>, vector<64x160xbf16>, vector<8x160xf32> -> vector<8x160xf32>
    %9 = arith.index_cast %c0_i32_4 : i32 to index
    %c0_7 = arith.constant 0 : index
    %c0_8 = arith.constant 0 : index
    %10 = vector.load %arg1[%9, %c0_7, %c0_8] : memref<8x8x160xbf16, #tpu.memory_space<vmem>>, vector<1x8x160xbf16>
    %11 = vector.shape_cast %10 : vector<1x8x160xbf16> to vector<8x160xbf16>
    %12 = arith.extf %11 : vector<8x160xbf16> to vector<8x160xf32>
    %13 = vector.extract_strided_slice %8 {offsets = [0, 128], sizes = [8, 32], strides = [1, 1]} : vector<8x160xf32> to vector<8x32xf32>
    %14 = vector.extract_strided_slice %12 {offsets = [0, 128], sizes = [8, 32], strides = [1, 1]} : vector<8x160xf32> to vector<8x32xf32>
    %15 = arith.addf %13, %14 : vector<8x32xf32>
    %16 = math.tanh %15 : vector<8x32xf32>
    %c0_9 = arith.constant 0 : index
    %c0_10 = arith.constant 0 : index
    %17 = vector.load %arg3[%c0_9, %c0_10] : memref<1x32xf32, #tpu.memory_space<vmem>>, vector<1x32xf32>
    %18 = vector.broadcast %17 : vector<1x32xf32> to vector<8x32xf32>
    %19 = arith.mulf %16, %18 : vector<8x32xf32>
    %cst_11 = arith.constant dense<0.000000e+00> : vector<8xf32>
    %20 = vector.multi_reduction <add>, %19, %cst_11 [1] : vector<8x32xf32> to vector<8xf32>
    %21 = vector.shape_cast %20 : vector<8xf32> to vector<8x1xf32>
    %cst_12 = arith.constant dense<0xFF800000> : vector<1xf32>
    %22 = vector.multi_reduction <maximumf>, %21, %cst_12 [0] : vector<8x1xf32> to vector<1xf32>
    %23 = vector.shape_cast %22 : vector<1xf32> to vector<1x1xf32>
    %24 = vector.broadcast %23 : vector<1x1xf32> to vector<8x1xf32>
    %25 = arith.subf %21, %24 : vector<8x1xf32>
    %26 = math.exp %25 : vector<8x1xf32>
    %cst_13 = arith.constant dense<0.000000e+00> : vector<1xf32>
    %27 = vector.multi_reduction <add>, %26, %cst_13 [0] : vector<8x1xf32> to vector<1xf32>
    %28 = vector.shape_cast %27 : vector<1xf32> to vector<1x1xf32>
    %29 = tpu.reciprocal %28 {approx = true} : vector<1x1xf32> -> vector<1x1xf32>
    %30 = vector.broadcast %29 : vector<1x1xf32> to vector<8x1xf32>
    %31 = arith.mulf %26, %30 : vector<8x1xf32>
    %32 = vector.extract_strided_slice %12 {offsets = [0, 0], sizes = [8, 128], strides = [1, 1]} : vector<8x160xf32> to vector<8x128xf32>
    %33 = vector.broadcast %31 : vector<8x1xf32> to vector<8x128xf32>
    %34 = arith.mulf %33, %32 : vector<8x128xf32>
    %35 = vector.extract_strided_slice %8 {offsets = [0, 0], sizes = [8, 128], strides = [1, 1]} : vector<8x160xf32> to vector<8x128xf32>
    %36 = arith.addf %34, %35 : vector<8x128xf32>
    %c0_14 = arith.constant 0 : index
    %c0_15 = arith.constant 0 : index
    %37 = vector.load %arg4[%c0_14, %c0_15] : memref<1x128xf32, #tpu.memory_space<vmem>>, vector<1x128xf32>
    %38 = vector.broadcast %37 : vector<1x128xf32> to vector<8x128xf32>
    %39 = arith.addf %36, %38 : vector<8x128xf32>
    %40 = vector.extract_strided_slice %39 {offsets = [0, 0], sizes = [8, 32], strides = [1, 1]} : vector<8x128xf32> to vector<8x32xf32>
    %41 = arith.negf %40 : vector<8x32xf32>
    %42 = math.exp %41 : vector<8x32xf32>
    %cst_16 = arith.constant 1.000000e+00 : f32
    %43 = vector.broadcast %cst_16 : f32 to vector<8x32xf32>
    %44 = arith.addf %43, %42 : vector<8x32xf32>
    %45 = arith.divf %43, %44 : vector<8x32xf32>
    %46 = vector.extract_strided_slice %39 {offsets = [0, 32], sizes = [8, 32], strides = [1, 1]} : vector<8x128xf32> to vector<8x32xf32>
    %47 = arith.negf %46 : vector<8x32xf32>
    %48 = math.exp %47 : vector<8x32xf32>
    %cst_17 = arith.constant 1.000000e+00 : f32
    %49 = vector.broadcast %cst_17 : f32 to vector<8x32xf32>
    %50 = arith.addf %49, %48 : vector<8x32xf32>
    %51 = arith.divf %49, %50 : vector<8x32xf32>
    %52 = vector.extract_strided_slice %39 {offsets = [0, 64], sizes = [8, 32], strides = [1, 1]} : vector<8x128xf32> to vector<8x32xf32>
    %53 = math.tanh %52 : vector<8x32xf32>
    %54 = vector.extract_strided_slice %39 {offsets = [0, 96], sizes = [8, 32], strides = [1, 1]} : vector<8x128xf32> to vector<8x32xf32>
    %55 = arith.negf %54 : vector<8x32xf32>
    %56 = math.exp %55 : vector<8x32xf32>
    %cst_18 = arith.constant 1.000000e+00 : f32
    %57 = vector.broadcast %cst_18 : f32 to vector<8x32xf32>
    %58 = arith.addf %57, %56 : vector<8x32xf32>
    %59 = arith.divf %57, %58 : vector<8x32xf32>
    %60 = arith.mulf %51, %4 : vector<8x32xf32>
    %61 = arith.mulf %45, %53 : vector<8x32xf32>
    %62 = arith.addf %60, %61 : vector<8x32xf32>
    %63 = math.tanh %62 : vector<8x32xf32>
    %64 = arith.mulf %59, %63 : vector<8x32xf32>
    %65 = arith.index_cast %c0_i32_4 : i32 to index
    %c0_19 = arith.constant 0 : index
    %c0_20 = arith.constant 0 : index
    %66 = vector.load %arg5[%65, %c0_19, %c0_20] : memref<8x8x32xf32, #tpu.memory_space<vmem>>, vector<1x8x32xf32>
    %67 = vector.shape_cast %66 : vector<1x8x32xf32> to vector<8x32xf32>
    %68 = vector.shape_cast %64 : vector<8x32xf32> to vector<1x8x32xf32>
    tpu.vector_store %arg5[%65, %c0_19, %c0_20], %68 {strides = array<i32>} : memref<8x8x32xf32, #tpu.memory_space<vmem>>, vector<1x8x32xf32>,
    %c1_i32 = arith.constant 1 : i32
    %69 = tpu.concatenate %64, %62 in 1 : vector<8x32xf32>, vector<8x32xf32> -> vector<8x64xf32>
    %70 = arith.truncf %69 : vector<8x64xf32> to vector<8x64xbf16>
    %c0_21 = arith.constant 0 : index
    %c0_22 = arith.constant 0 : index
    %71 = vector.load %arg2[%c0_21, %c0_22] : memref<64x160xbf16, #tpu.memory_space<vmem>>, vector<64x160xbf16>
    %cst_23 = arith.constant dense<0.000000e+00> : vector<8x160xf32>
    %72 = tpu.matmul %70, %71, %cst_23 {dimension_numbers = #tpu.dot_dimension_numbers<[1], [0], [0], [1], [0, 0, 1, 1], [], []>} : vector<8x64xbf16>, vector<64x160xbf16>, vector<8x160xf32> -> vector<8x160xf32>
    %73 = arith.index_cast %c1_i32 : i32 to index
    %c0_24 = arith.constant 0 : index
    %c0_25 = arith.constant 0 : index
    %74 = vector.load %arg1[%73, %c0_24, %c0_25] : memref<8x8x160xbf16, #tpu.memory_space<vmem>>, vector<1x8x160xbf16>
    %75 = vector.shape_cast %74 : vector<1x8x160xbf16> to vector<8x160xbf16>
    %76 = arith.extf %75 : vector<8x160xbf16> to vector<8x160xf32>
    %77 = vector.extract_strided_slice %72 {offsets = [0, 128], sizes = [8, 32], strides = [1, 1]} : vector<8x160xf32> to vector<8x32xf32>
    %78 = vector.extract_strided_slice %76 {offsets = [0, 128], sizes = [8, 32], strides = [1, 1]} : vector<8x160xf32> to vector<8x32xf32>
    %79 = arith.addf %77, %78 : vector<8x32xf32>
    %80 = math.tanh %79 : vector<8x32xf32>
    %c0_26 = arith.constant 0 : index
    %c0_27 = arith.constant 0 : index
    %81 = vector.load %arg3[%c0_26, %c0_27] : memref<1x32xf32, #tpu.memory_space<vmem>>, vector<1x32xf32>
    %82 = vector.broadcast %81 : vector<1x32xf32> to vector<8x32xf32>
    %83 = arith.mulf %80, %82 : vector<8x32xf32>
    %cst_28 = arith.constant dense<0.000000e+00> : vector<8xf32>
    %84 = vector.multi_reduction <add>, %83, %cst_28 [1] : vector<8x32xf32> to vector<8xf32>
    %85 = vector.shape_cast %84 : vector<8xf32> to vector<8x1xf32>
    %cst_29 = arith.constant dense<0xFF800000> : vector<1xf32>
    %86 = vector.multi_reduction <maximumf>, %85, %cst_29 [0] : vector<8x1xf32> to vector<1xf32>
    %87 = vector.shape_cast %86 : vector<1xf32> to vector<1x1xf32>
    %88 = vector.broadcast %87 : vector<1x1xf32> to vector<8x1xf32>
    %89 = arith.subf %85, %88 : vector<8x1xf32>
    %90 = math.exp %89 : vector<8x1xf32>
    %cst_30 = arith.constant dense<0.000000e+00> : vector<1xf32>
    %91 = vector.multi_reduction <add>, %90, %cst_30 [0] : vector<8x1xf32> to vector<1xf32>
    %92 = vector.shape_cast %91 : vector<1xf32> to vector<1x1xf32>
    %93 = tpu.reciprocal %92 {approx = true} : vector<1x1xf32> -> vector<1x1xf32>
    %94 = vector.broadcast %93 : vector<1x1xf32> to vector<8x1xf32>
    %95 = arith.mulf %90, %94 : vector<8x1xf32>
    %96 = vector.extract_strided_slice %76 {offsets = [0, 0], sizes = [8, 128], strides = [1, 1]} : vector<8x160xf32> to vector<8x128xf32>
    %97 = vector.broadcast %95 : vector<8x1xf32> to vector<8x128xf32>
    %98 = arith.mulf %97, %96 : vector<8x128xf32>
    %99 = vector.extract_strided_slice %72 {offsets = [0, 0], sizes = [8, 128], strides = [1, 1]} : vector<8x160xf32> to vector<8x128xf32>
    %100 = arith.addf %98, %99 : vector<8x128xf32>
    %c0_31 = arith.constant 0 : index
    %c0_32 = arith.constant 0 : index
    %101 = vector.load %arg4[%c0_31, %c0_32] : memref<1x128xf32, #tpu.memory_space<vmem>>, vector<1x128xf32>
    %102 = vector.broadcast %101 : vector<1x128xf32> to vector<8x128xf32>
    %103 = arith.addf %100, %102 : vector<8x128xf32>
    %104 = vector.extract_strided_slice %103 {offsets = [0, 0], sizes = [8, 32], strides = [1, 1]} : vector<8x128xf32> to vector<8x32xf32>
    %105 = arith.negf %104 : vector<8x32xf32>
    %106 = math.exp %105 : vector<8x32xf32>
    %cst_33 = arith.constant 1.000000e+00 : f32
    %107 = vector.broadcast %cst_33 : f32 to vector<8x32xf32>
    %108 = arith.addf %107, %106 : vector<8x32xf32>
    %109 = arith.divf %107, %108 : vector<8x32xf32>
    %110 = vector.extract_strided_slice %103 {offsets = [0, 32], sizes = [8, 32], strides = [1, 1]} : vector<8x128xf32> to vector<8x32xf32>
    %111 = arith.negf %110 : vector<8x32xf32>
    %112 = math.exp %111 : vector<8x32xf32>
    %cst_34 = arith.constant 1.000000e+00 : f32
    %113 = vector.broadcast %cst_34 : f32 to vector<8x32xf32>
    %114 = arith.addf %113, %112 : vector<8x32xf32>
    %115 = arith.divf %113, %114 : vector<8x32xf32>
    %116 = vector.extract_strided_slice %103 {offsets = [0, 64], sizes = [8, 32], strides = [1, 1]} : vector<8x128xf32> to vector<8x32xf32>
    %117 = math.tanh %116 : vector<8x32xf32>
    %118 = vector.extract_strided_slice %103 {offsets = [0, 96], sizes = [8, 32], strides = [1, 1]} : vector<8x128xf32> to vector<8x32xf32>
    %119 = arith.negf %118 : vector<8x32xf32>
    %120 = math.exp %119 : vector<8x32xf32>
    %cst_35 = arith.constant 1.000000e+00 : f32
    %121 = vector.broadcast %cst_35 : f32 to vector<8x32xf32>
    %122 = arith.addf %121, %120 : vector<8x32xf32>
    %123 = arith.divf %121, %122 : vector<8x32xf32>
    %124 = arith.mulf %115, %62 : vector<8x32xf32>
    %125 = arith.mulf %109, %117 : vector<8x32xf32>
    %126 = arith.addf %124, %125 : vector<8x32xf32>
    %127 = math.tanh %126 : vector<8x32xf32>
    %128 = arith.mulf %123, %127 : vector<8x32xf32>
    %129 = arith.index_cast %c1_i32 : i32 to index
    %c0_36 = arith.constant 0 : index
    %c0_37 = arith.constant 0 : index
    %130 = vector.load %arg5[%129, %c0_36, %c0_37] : memref<8x8x32xf32, #tpu.memory_space<vmem>>, vector<1x8x32xf32>
    %131 = vector.shape_cast %130 : vector<1x8x32xf32> to vector<8x32xf32>
    %132 = vector.shape_cast %128 : vector<8x32xf32> to vector<1x8x32xf32>
    tpu.vector_store %arg5[%129, %c0_36, %c0_37], %132 {strides = array<i32>} : memref<8x8x32xf32, #tpu.memory_space<vmem>>, vector<1x8x32xf32>,
    %c2_i32 = arith.constant 2 : i32
    %133 = tpu.concatenate %128, %126 in 1 : vector<8x32xf32>, vector<8x32xf32> -> vector<8x64xf32>
    %134 = arith.truncf %133 : vector<8x64xf32> to vector<8x64xbf16>
    %c0_38 = arith.constant 0 : index
    %c0_39 = arith.constant 0 : index
    %135 = vector.load %arg2[%c0_38, %c0_39] : memref<64x160xbf16, #tpu.memory_space<vmem>>, vector<64x160xbf16>
    %cst_40 = arith.constant dense<0.000000e+00> : vector<8x160xf32>
    %136 = tpu.matmul %134, %135, %cst_40 {dimension_numbers = #tpu.dot_dimension_numbers<[1], [0], [0], [1], [0, 0, 1, 1], [], []>} : vector<8x64xbf16>, vector<64x160xbf16>, vector<8x160xf32> -> vector<8x160xf32>
    %137 = arith.index_cast %c2_i32 : i32 to index
    %c0_41 = arith.constant 0 : index
    %c0_42 = arith.constant 0 : index
    %138 = vector.load %arg1[%137, %c0_41, %c0_42] : memref<8x8x160xbf16, #tpu.memory_space<vmem>>, vector<1x8x160xbf16>
    %139 = vector.shape_cast %138 : vector<1x8x160xbf16> to vector<8x160xbf16>
    %140 = arith.extf %139 : vector<8x160xbf16> to vector<8x160xf32>
    %141 = vector.extract_strided_slice %136 {offsets = [0, 128], sizes = [8, 32], strides = [1, 1]} : vector<8x160xf32> to vector<8x32xf32>
    %142 = vector.extract_strided_slice %140 {offsets = [0, 128], sizes = [8, 32], strides = [1, 1]} : vector<8x160xf32> to vector<8x32xf32>
    %143 = arith.addf %141, %142 : vector<8x32xf32>
    %144 = math.tanh %143 : vector<8x32xf32>
    %c0_43 = arith.constant 0 : index
    %c0_44 = arith.constant 0 : index
    %145 = vector.load %arg3[%c0_43, %c0_44] : memref<1x32xf32, #tpu.memory_space<vmem>>, vector<1x32xf32>
    %146 = vector.broadcast %145 : vector<1x32xf32> to vector<8x32xf32>
    %147 = arith.mulf %144, %146 : vector<8x32xf32>
    %cst_45 = arith.constant dense<0.000000e+00> : vector<8xf32>
    %148 = vector.multi_reduction <add>, %147, %cst_45 [1] : vector<8x32xf32> to vector<8xf32>
    %149 = vector.shape_cast %148 : vector<8xf32> to vector<8x1xf32>
    %cst_46 = arith.constant dense<0xFF800000> : vector<1xf32>
    %150 = vector.multi_reduction <maximumf>, %149, %cst_46 [0] : vector<8x1xf32> to vector<1xf32>
    %151 = vector.shape_cast %150 : vector<1xf32> to vector<1x1xf32>
    %152 = vector.broadcast %151 : vector<1x1xf32> to vector<8x1xf32>
    %153 = arith.subf %149, %152 : vector<8x1xf32>
    %154 = math.exp %153 : vector<8x1xf32>
    %cst_47 = arith.constant dense<0.000000e+00> : vector<1xf32>
    %155 = vector.multi_reduction <add>, %154, %cst_47 [0] : vector<8x1xf32> to vector<1xf32>
    %156 = vector.shape_cast %155 : vector<1xf32> to vector<1x1xf32>
    %157 = tpu.reciprocal %156 {approx = true} : vector<1x1xf32> -> vector<1x1xf32>
    %158 = vector.broadcast %157 : vector<1x1xf32> to vector<8x1xf32>
    %159 = arith.mulf %154, %158 : vector<8x1xf32>
    %160 = vector.extract_strided_slice %140 {offsets = [0, 0], sizes = [8, 128], strides = [1, 1]} : vector<8x160xf32> to vector<8x128xf32>
    %161 = vector.broadcast %159 : vector<8x1xf32> to vector<8x128xf32>
    %162 = arith.mulf %161, %160 : vector<8x128xf32>
    %163 = vector.extract_strided_slice %136 {offsets = [0, 0], sizes = [8, 128], strides = [1, 1]} : vector<8x160xf32> to vector<8x128xf32>
    %164 = arith.addf %162, %163 : vector<8x128xf32>
    %c0_48 = arith.constant 0 : index
    %c0_49 = arith.constant 0 : index
    %165 = vector.load %arg4[%c0_48, %c0_49] : memref<1x128xf32, #tpu.memory_space<vmem>>, vector<1x128xf32>
    %166 = vector.broadcast %165 : vector<1x128xf32> to vector<8x128xf32>
    %167 = arith.addf %164, %166 : vector<8x128xf32>
    %168 = vector.extract_strided_slice %167 {offsets = [0, 0], sizes = [8, 32], strides = [1, 1]} : vector<8x128xf32> to vector<8x32xf32>
    %169 = arith.negf %168 : vector<8x32xf32>
    %170 = math.exp %169 : vector<8x32xf32>
    %cst_50 = arith.constant 1.000000e+00 : f32
    %171 = vector.broadcast %cst_50 : f32 to vector<8x32xf32>
    %172 = arith.addf %171, %170 : vector<8x32xf32>
    %173 = arith.divf %171, %172 : vector<8x32xf32>
    %174 = vector.extract_strided_slice %167 {offsets = [0, 32], sizes = [8, 32], strides = [1, 1]} : vector<8x128xf32> to vector<8x32xf32>
    %175 = arith.negf %174 : vector<8x32xf32>
    %176 = math.exp %175 : vector<8x32xf32>
    %cst_51 = arith.constant 1.000000e+00 : f32
    %177 = vector.broadcast %cst_51 : f32 to vector<8x32xf32>
    %178 = arith.addf %177, %176 : vector<8x32xf32>
    %179 = arith.divf %177, %178 : vector<8x32xf32>
    %180 = vector.extract_strided_slice %167 {offsets = [0, 64], sizes = [8, 32], strides = [1, 1]} : vector<8x128xf32> to vector<8x32xf32>
    %181 = math.tanh %180 : vector<8x32xf32>
    %182 = vector.extract_strided_slice %167 {offsets = [0, 96], sizes = [8, 32], strides = [1, 1]} : vector<8x128xf32> to vector<8x32xf32>
    %183 = arith.negf %182 : vector<8x32xf32>
    %184 = math.exp %183 : vector<8x32xf32>
    %cst_52 = arith.constant 1.000000e+00 : f32
    %185 = vector.broadcast %cst_52 : f32 to vector<8x32xf32>
    %186 = arith.addf %185, %184 : vector<8x32xf32>
    %187 = arith.divf %185, %186 : vector<8x32xf32>
    %188 = arith.mulf %179, %126 : vector<8x32xf32>
    %189 = arith.mulf %173, %181 : vector<8x32xf32>
    %190 = arith.addf %188, %189 : vector<8x32xf32>
    %191 = math.tanh %190 : vector<8x32xf32>
    %192 = arith.mulf %187, %191 : vector<8x32xf32>
    %193 = arith.index_cast %c2_i32 : i32 to index
    %c0_53 = arith.constant 0 : index
    %c0_54 = arith.constant 0 : index
    %194 = vector.load %arg5[%193, %c0_53, %c0_54] : memref<8x8x32xf32, #tpu.memory_space<vmem>>, vector<1x8x32xf32>
    %195 = vector.shape_cast %194 : vector<1x8x32xf32> to vector<8x32xf32>
    %196 = vector.shape_cast %192 : vector<8x32xf32> to vector<1x8x32xf32>
    tpu.vector_store %arg5[%193, %c0_53, %c0_54], %196 {strides = array<i32>} : memref<8x8x32xf32, #tpu.memory_space<vmem>>, vector<1x8x32xf32>,
    %c3_i32 = arith.constant 3 : i32
    %197 = tpu.concatenate %192, %190 in 1 : vector<8x32xf32>, vector<8x32xf32> -> vector<8x64xf32>
    %198 = arith.truncf %197 : vector<8x64xf32> to vector<8x64xbf16>
    %c0_55 = arith.constant 0 : index
    %c0_56 = arith.constant 0 : index
    %199 = vector.load %arg2[%c0_55, %c0_56] : memref<64x160xbf16, #tpu.memory_space<vmem>>, vector<64x160xbf16>
    %cst_57 = arith.constant dense<0.000000e+00> : vector<8x160xf32>
    %200 = tpu.matmul %198, %199, %cst_57 {dimension_numbers = #tpu.dot_dimension_numbers<[1], [0], [0], [1], [0, 0, 1, 1], [], []>} : vector<8x64xbf16>, vector<64x160xbf16>, vector<8x160xf32> -> vector<8x160xf32>
    %201 = arith.index_cast %c3_i32 : i32 to index
    %c0_58 = arith.constant 0 : index
    %c0_59 = arith.constant 0 : index
    %202 = vector.load %arg1[%201, %c0_58, %c0_59] : memref<8x8x160xbf16, #tpu.memory_space<vmem>>, vector<1x8x160xbf16>
    %203 = vector.shape_cast %202 : vector<1x8x160xbf16> to vector<8x160xbf16>
    %204 = arith.extf %203 : vector<8x160xbf16> to vector<8x160xf32>
    %205 = vector.extract_strided_slice %200 {offsets = [0, 128], sizes = [8, 32], strides = [1, 1]} : vector<8x160xf32> to vector<8x32xf32>
    %206 = vector.extract_strided_slice %204 {offsets = [0, 128], sizes = [8, 32], strides = [1, 1]} : vector<8x160xf32> to vector<8x32xf32>
    %207 = arith.addf %205, %206 : vector<8x32xf32>
    %208 = math.tanh %207 : vector<8x32xf32>
    %c0_60 = arith.constant 0 : index
    %c0_61 = arith.constant 0 : index
    %209 = vector.load %arg3[%c0_60, %c0_61] : memref<1x32xf32, #tpu.memory_space<vmem>>, vector<1x32xf32>
    %210 = vector.broadcast %209 : vector<1x32xf32> to vector<8x32xf32>
    %211 = arith.mulf %208, %210 : vector<8x32xf32>
    %cst_62 = arith.constant dense<0.000000e+00> : vector<8xf32>
    %212 = vector.multi_reduction <add>, %211, %cst_62 [1] : vector<8x32xf32> to vector<8xf32>
    %213 = vector.shape_cast %212 : vector<8xf32> to vector<8x1xf32>
    %cst_63 = arith.constant dense<0xFF800000> : vector<1xf32>
    %214 = vector.multi_reduction <maximumf>, %213, %cst_63 [0] : vector<8x1xf32> to vector<1xf32>
    %215 = vector.shape_cast %214 : vector<1xf32> to vector<1x1xf32>
    %216 = vector.broadcast %215 : vector<1x1xf32> to vector<8x1xf32>
    %217 = arith.subf %213, %216 : vector<8x1xf32>
    %218 = math.exp %217 : vector<8x1xf32>
    %cst_64 = arith.constant dense<0.000000e+00> : vector<1xf32>
    %219 = vector.multi_reduction <add>, %218, %cst_64 [0] : vector<8x1xf32> to vector<1xf32>
    %220 = vector.shape_cast %219 : vector<1xf32> to vector<1x1xf32>
    %221 = tpu.reciprocal %220 {approx = true} : vector<1x1xf32> -> vector<1x1xf32>
    %222 = vector.broadcast %221 : vector<1x1xf32> to vector<8x1xf32>
    %223 = arith.mulf %218, %222 : vector<8x1xf32>
    %224 = vector.extract_strided_slice %204 {offsets = [0, 0], sizes = [8, 128], strides = [1, 1]} : vector<8x160xf32> to vector<8x128xf32>
    %225 = vector.broadcast %223 : vector<8x1xf32> to vector<8x128xf32>
    %226 = arith.mulf %225, %224 : vector<8x128xf32>
    %227 = vector.extract_strided_slice %200 {offsets = [0, 0], sizes = [8, 128], strides = [1, 1]} : vector<8x160xf32> to vector<8x128xf32>
    %228 = arith.addf %226, %227 : vector<8x128xf32>
    %c0_65 = arith.constant 0 : index
    %c0_66 = arith.constant 0 : index
    %229 = vector.load %arg4[%c0_65, %c0_66] : memref<1x128xf32, #tpu.memory_space<vmem>>, vector<1x128xf32>
    %230 = vector.broadcast %229 : vector<1x128xf32> to vector<8x128xf32>
    %231 = arith.addf %228, %230 : vector<8x128xf32>
    %232 = vector.extract_strided_slice %231 {offsets = [0, 0], sizes = [8, 32], strides = [1, 1]} : vector<8x128xf32> to vector<8x32xf32>
    %233 = arith.negf %232 : vector<8x32xf32>
    %234 = math.exp %233 : vector<8x32xf32>
    %cst_67 = arith.constant 1.000000e+00 : f32
    %235 = vector.broadcast %cst_67 : f32 to vector<8x32xf32>
    %236 = arith.addf %235, %234 : vector<8x32xf32>
    %237 = arith.divf %235, %236 : vector<8x32xf32>
    %238 = vector.extract_strided_slice %231 {offsets = [0, 32], sizes = [8, 32], strides = [1, 1]} : vector<8x128xf32> to vector<8x32xf32>
    %239 = arith.negf %238 : vector<8x32xf32>
    %240 = math.exp %239 : vector<8x32xf32>
    %cst_68 = arith.constant 1.000000e+00 : f32
    %241 = vector.broadcast %cst_68 : f32 to vector<8x32xf32>
    %242 = arith.addf %241, %240 : vector<8x32xf32>
    %243 = arith.divf %241, %242 : vector<8x32xf32>
    %244 = vector.extract_strided_slice %231 {offsets = [0, 64], sizes = [8, 32], strides = [1, 1]} : vector<8x128xf32> to vector<8x32xf32>
    %245 = math.tanh %244 : vector<8x32xf32>
    %246 = vector.extract_strided_slice %231 {offsets = [0, 96], sizes = [8, 32], strides = [1, 1]} : vector<8x128xf32> to vector<8x32xf32>
    %247 = arith.negf %246 : vector<8x32xf32>
    %248 = math.exp %247 : vector<8x32xf32>
    %cst_69 = arith.constant 1.000000e+00 : f32
    %249 = vector.broadcast %cst_69 : f32 to vector<8x32xf32>
    %250 = arith.addf %249, %248 : vector<8x32xf32>
    %251 = arith.divf %249, %250 : vector<8x32xf32>
    %252 = arith.mulf %243, %190 : vector<8x32xf32>
    %253 = arith.mulf %237, %245 : vector<8x32xf32>
    %254 = arith.addf %252, %253 : vector<8x32xf32>
    %255 = math.tanh %254 : vector<8x32xf32>
    %256 = arith.mulf %251, %255 : vector<8x32xf32>
    %257 = arith.index_cast %c3_i32 : i32 to index
    %c0_70 = arith.constant 0 : index
    %c0_71 = arith.constant 0 : index
    %258 = vector.load %arg5[%257, %c0_70, %c0_71] : memref<8x8x32xf32, #tpu.memory_space<vmem>>, vector<1x8x32xf32>
    %259 = vector.shape_cast %258 : vector<1x8x32xf32> to vector<8x32xf32>
    %260 = vector.shape_cast %256 : vector<8x32xf32> to vector<1x8x32xf32>
    tpu.vector_store %arg5[%257, %c0_70, %c0_71], %260 {strides = array<i32>} : memref<8x8x32xf32, #tpu.memory_space<vmem>>, vector<1x8x32xf32>,
    %c4_i32 = arith.constant 4 : i32
    %261 = tpu.concatenate %256, %254 in 1 : vector<8x32xf32>, vector<8x32xf32> -> vector<8x64xf32>
    %262 = arith.truncf %261 : vector<8x64xf32> to vector<8x64xbf16>
    %c0_72 = arith.constant 0 : index
    %c0_73 = arith.constant 0 : index
    %263 = vector.load %arg2[%c0_72, %c0_73] : memref<64x160xbf16, #tpu.memory_space<vmem>>, vector<64x160xbf16>
    %cst_74 = arith.constant dense<0.000000e+00> : vector<8x160xf32>
    %264 = tpu.matmul %262, %263, %cst_74 {dimension_numbers = #tpu.dot_dimension_numbers<[1], [0], [0], [1], [0, 0, 1, 1], [], []>} : vector<8x64xbf16>, vector<64x160xbf16>, vector<8x160xf32> -> vector<8x160xf32>
    %265 = arith.index_cast %c4_i32 : i32 to index
    %c0_75 = arith.constant 0 : index
    %c0_76 = arith.constant 0 : index
    %266 = vector.load %arg1[%265, %c0_75, %c0_76] : memref<8x8x160xbf16, #tpu.memory_space<vmem>>, vector<1x8x160xbf16>
    %267 = vector.shape_cast %266 : vector<1x8x160xbf16> to vector<8x160xbf16>
    %268 = arith.extf %267 : vector<8x160xbf16> to vector<8x160xf32>
    %269 = vector.extract_strided_slice %264 {offsets = [0, 128], sizes = [8, 32], strides = [1, 1]} : vector<8x160xf32> to vector<8x32xf32>
    %270 = vector.extract_strided_slice %268 {offsets = [0, 128], sizes = [8, 32], strides = [1, 1]} : vector<8x160xf32> to vector<8x32xf32>
    %271 = arith.addf %269, %270 : vector<8x32xf32>
    %272 = math.tanh %271 : vector<8x32xf32>
    %c0_77 = arith.constant 0 : index
    %c0_78 = arith.constant 0 : index
    %273 = vector.load %arg3[%c0_77, %c0_78] : memref<1x32xf32, #tpu.memory_space<vmem>>, vector<1x32xf32>
    %274 = vector.broadcast %273 : vector<1x32xf32> to vector<8x32xf32>
    %275 = arith.mulf %272, %274 : vector<8x32xf32>
    %cst_79 = arith.constant dense<0.000000e+00> : vector<8xf32>
    %276 = vector.multi_reduction <add>, %275, %cst_79 [1] : vector<8x32xf32> to vector<8xf32>
    %277 = vector.shape_cast %276 : vector<8xf32> to vector<8x1xf32>
    %cst_80 = arith.constant dense<0xFF800000> : vector<1xf32>
    %278 = vector.multi_reduction <maximumf>, %277, %cst_80 [0] : vector<8x1xf32> to vector<1xf32>
    %279 = vector.shape_cast %278 : vector<1xf32> to vector<1x1xf32>
    %280 = vector.broadcast %279 : vector<1x1xf32> to vector<8x1xf32>
    %281 = arith.subf %277, %280 : vector<8x1xf32>
    %282 = math.exp %281 : vector<8x1xf32>
    %cst_81 = arith.constant dense<0.000000e+00> : vector<1xf32>
    %283 = vector.multi_reduction <add>, %282, %cst_81 [0] : vector<8x1xf32> to vector<1xf32>
    %284 = vector.shape_cast %283 : vector<1xf32> to vector<1x1xf32>
    %285 = tpu.reciprocal %284 {approx = true} : vector<1x1xf32> -> vector<1x1xf32>
    %286 = vector.broadcast %285 : vector<1x1xf32> to vector<8x1xf32>
    %287 = arith.mulf %282, %286 : vector<8x1xf32>
    %288 = vector.extract_strided_slice %268 {offsets = [0, 0], sizes = [8, 128], strides = [1, 1]} : vector<8x160xf32> to vector<8x128xf32>
    %289 = vector.broadcast %287 : vector<8x1xf32> to vector<8x128xf32>
    %290 = arith.mulf %289, %288 : vector<8x128xf32>
    %291 = vector.extract_strided_slice %264 {offsets = [0, 0], sizes = [8, 128], strides = [1, 1]} : vector<8x160xf32> to vector<8x128xf32>
    %292 = arith.addf %290, %291 : vector<8x128xf32>
    %c0_82 = arith.constant 0 : index
    %c0_83 = arith.constant 0 : index
    %293 = vector.load %arg4[%c0_82, %c0_83] : memref<1x128xf32, #tpu.memory_space<vmem>>, vector<1x128xf32>
    %294 = vector.broadcast %293 : vector<1x128xf32> to vector<8x128xf32>
    %295 = arith.addf %292, %294 : vector<8x128xf32>
    %296 = vector.extract_strided_slice %295 {offsets = [0, 0], sizes = [8, 32], strides = [1, 1]} : vector<8x128xf32> to vector<8x32xf32>
    %297 = arith.negf %296 : vector<8x32xf32>
    %298 = math.exp %297 : vector<8x32xf32>
    %cst_84 = arith.constant 1.000000e+00 : f32
    %299 = vector.broadcast %cst_84 : f32 to vector<8x32xf32>
    %300 = arith.addf %299, %298 : vector<8x32xf32>
    %301 = arith.divf %299, %300 : vector<8x32xf32>
    %302 = vector.extract_strided_slice %295 {offsets = [0, 32], sizes = [8, 32], strides = [1, 1]} : vector<8x128xf32> to vector<8x32xf32>
    %303 = arith.negf %302 : vector<8x32xf32>
    %304 = math.exp %303 : vector<8x32xf32>
    %cst_85 = arith.constant 1.000000e+00 : f32
    %305 = vector.broadcast %cst_85 : f32 to vector<8x32xf32>
    %306 = arith.addf %305, %304 : vector<8x32xf32>
    %307 = arith.divf %305, %306 : vector<8x32xf32>
    %308 = vector.extract_strided_slice %295 {offsets = [0, 64], sizes = [8, 32], strides = [1, 1]} : vector<8x128xf32> to vector<8x32xf32>
    %309 = math.tanh %308 : vector<8x32xf32>
    %310 = vector.extract_strided_slice %295 {offsets = [0, 96], sizes = [8, 32], strides = [1, 1]} : vector<8x128xf32> to vector<8x32xf32>
    %311 = arith.negf %310 : vector<8x32xf32>
    %312 = math.exp %311 : vector<8x32xf32>
    %cst_86 = arith.constant 1.000000e+00 : f32
    %313 = vector.broadcast %cst_86 : f32 to vector<8x32xf32>
    %314 = arith.addf %313, %312 : vector<8x32xf32>
    %315 = arith.divf %313, %314 : vector<8x32xf32>
    %316 = arith.mulf %307, %254 : vector<8x32xf32>
    %317 = arith.mulf %301, %309 : vector<8x32xf32>
    %318 = arith.addf %316, %317 : vector<8x32xf32>
    %319 = math.tanh %318 : vector<8x32xf32>
    %320 = arith.mulf %315, %319 : vector<8x32xf32>
    %321 = arith.index_cast %c4_i32 : i32 to index
    %c0_87 = arith.constant 0 : index
    %c0_88 = arith.constant 0 : index
    %322 = vector.load %arg5[%321, %c0_87, %c0_88] : memref<8x8x32xf32, #tpu.memory_space<vmem>>, vector<1x8x32xf32>
    %323 = vector.shape_cast %322 : vector<1x8x32xf32> to vector<8x32xf32>
    %324 = vector.shape_cast %320 : vector<8x32xf32> to vector<1x8x32xf32>
    tpu.vector_store %arg5[%321, %c0_87, %c0_88], %324 {strides = array<i32>} : memref<8x8x32xf32, #tpu.memory_space<vmem>>, vector<1x8x32xf32>,
    %c5_i32 = arith.constant 5 : i32
    %325 = tpu.concatenate %320, %318 in 1 : vector<8x32xf32>, vector<8x32xf32> -> vector<8x64xf32>
    %326 = arith.truncf %325 : vector<8x64xf32> to vector<8x64xbf16>
    %c0_89 = arith.constant 0 : index
    %c0_90 = arith.constant 0 : index
    %327 = vector.load %arg2[%c0_89, %c0_90] : memref<64x160xbf16, #tpu.memory_space<vmem>>, vector<64x160xbf16>
    %cst_91 = arith.constant dense<0.000000e+00> : vector<8x160xf32>
    %328 = tpu.matmul %326, %327, %cst_91 {dimension_numbers = #tpu.dot_dimension_numbers<[1], [0], [0], [1], [0, 0, 1, 1], [], []>} : vector<8x64xbf16>, vector<64x160xbf16>, vector<8x160xf32> -> vector<8x160xf32>
    %329 = arith.index_cast %c5_i32 : i32 to index
    %c0_92 = arith.constant 0 : index
    %c0_93 = arith.constant 0 : index
    %330 = vector.load %arg1[%329, %c0_92, %c0_93] : memref<8x8x160xbf16, #tpu.memory_space<vmem>>, vector<1x8x160xbf16>
    %331 = vector.shape_cast %330 : vector<1x8x160xbf16> to vector<8x160xbf16>
    %332 = arith.extf %331 : vector<8x160xbf16> to vector<8x160xf32>
    %333 = vector.extract_strided_slice %328 {offsets = [0, 128], sizes = [8, 32], strides = [1, 1]} : vector<8x160xf32> to vector<8x32xf32>
    %334 = vector.extract_strided_slice %332 {offsets = [0, 128], sizes = [8, 32], strides = [1, 1]} : vector<8x160xf32> to vector<8x32xf32>
    %335 = arith.addf %333, %334 : vector<8x32xf32>
    %336 = math.tanh %335 : vector<8x32xf32>
    %c0_94 = arith.constant 0 : index
    %c0_95 = arith.constant 0 : index
    %337 = vector.load %arg3[%c0_94, %c0_95] : memref<1x32xf32, #tpu.memory_space<vmem>>, vector<1x32xf32>
    %338 = vector.broadcast %337 : vector<1x32xf32> to vector<8x32xf32>
    %339 = arith.mulf %336, %338 : vector<8x32xf32>
    %cst_96 = arith.constant dense<0.000000e+00> : vector<8xf32>
    %340 = vector.multi_reduction <add>, %339, %cst_96 [1] : vector<8x32xf32> to vector<8xf32>
    %341 = vector.shape_cast %340 : vector<8xf32> to vector<8x1xf32>
    %cst_97 = arith.constant dense<0xFF800000> : vector<1xf32>
    %342 = vector.multi_reduction <maximumf>, %341, %cst_97 [0] : vector<8x1xf32> to vector<1xf32>
    %343 = vector.shape_cast %342 : vector<1xf32> to vector<1x1xf32>
    %344 = vector.broadcast %343 : vector<1x1xf32> to vector<8x1xf32>
    %345 = arith.subf %341, %344 : vector<8x1xf32>
    %346 = math.exp %345 : vector<8x1xf32>
    %cst_98 = arith.constant dense<0.000000e+00> : vector<1xf32>
    %347 = vector.multi_reduction <add>, %346, %cst_98 [0] : vector<8x1xf32> to vector<1xf32>
    %348 = vector.shape_cast %347 : vector<1xf32> to vector<1x1xf32>
    %349 = tpu.reciprocal %348 {approx = true} : vector<1x1xf32> -> vector<1x1xf32>
    %350 = vector.broadcast %349 : vector<1x1xf32> to vector<8x1xf32>
    %351 = arith.mulf %346, %350 : vector<8x1xf32>
    %352 = vector.extract_strided_slice %332 {offsets = [0, 0], sizes = [8, 128], strides = [1, 1]} : vector<8x160xf32> to vector<8x128xf32>
    %353 = vector.broadcast %351 : vector<8x1xf32> to vector<8x128xf32>
    %354 = arith.mulf %353, %352 : vector<8x128xf32>
    %355 = vector.extract_strided_slice %328 {offsets = [0, 0], sizes = [8, 128], strides = [1, 1]} : vector<8x160xf32> to vector<8x128xf32>
    %356 = arith.addf %354, %355 : vector<8x128xf32>
    %c0_99 = arith.constant 0 : index
    %c0_100 = arith.constant 0 : index
    %357 = vector.load %arg4[%c0_99, %c0_100] : memref<1x128xf32, #tpu.memory_space<vmem>>, vector<1x128xf32>
    %358 = vector.broadcast %357 : vector<1x128xf32> to vector<8x128xf32>
    %359 = arith.addf %356, %358 : vector<8x128xf32>
    %360 = vector.extract_strided_slice %359 {offsets = [0, 0], sizes = [8, 32], strides = [1, 1]} : vector<8x128xf32> to vector<8x32xf32>
    %361 = arith.negf %360 : vector<8x32xf32>
    %362 = math.exp %361 : vector<8x32xf32>
    %cst_101 = arith.constant 1.000000e+00 : f32
    %363 = vector.broadcast %cst_101 : f32 to vector<8x32xf32>
    %364 = arith.addf %363, %362 : vector<8x32xf32>
    %365 = arith.divf %363, %364 : vector<8x32xf32>
    %366 = vector.extract_strided_slice %359 {offsets = [0, 32], sizes = [8, 32], strides = [1, 1]} : vector<8x128xf32> to vector<8x32xf32>
    %367 = arith.negf %366 : vector<8x32xf32>
    %368 = math.exp %367 : vector<8x32xf32>
    %cst_102 = arith.constant 1.000000e+00 : f32
    %369 = vector.broadcast %cst_102 : f32 to vector<8x32xf32>
    %370 = arith.addf %369, %368 : vector<8x32xf32>
    %371 = arith.divf %369, %370 : vector<8x32xf32>
    %372 = vector.extract_strided_slice %359 {offsets = [0, 64], sizes = [8, 32], strides = [1, 1]} : vector<8x128xf32> to vector<8x32xf32>
    %373 = math.tanh %372 : vector<8x32xf32>
    %374 = vector.extract_strided_slice %359 {offsets = [0, 96], sizes = [8, 32], strides = [1, 1]} : vector<8x128xf32> to vector<8x32xf32>
    %375 = arith.negf %374 : vector<8x32xf32>
    %376 = math.exp %375 : vector<8x32xf32>
    %cst_103 = arith.constant 1.000000e+00 : f32
    %377 = vector.broadcast %cst_103 : f32 to vector<8x32xf32>
    %378 = arith.addf %377, %376 : vector<8x32xf32>
    %379 = arith.divf %377, %378 : vector<8x32xf32>
    %380 = arith.mulf %371, %318 : vector<8x32xf32>
    %381 = arith.mulf %365, %373 : vector<8x32xf32>
    %382 = arith.addf %380, %381 : vector<8x32xf32>
    %383 = math.tanh %382 : vector<8x32xf32>
    %384 = arith.mulf %379, %383 : vector<8x32xf32>
    %385 = arith.index_cast %c5_i32 : i32 to index
    %c0_104 = arith.constant 0 : index
    %c0_105 = arith.constant 0 : index
    %386 = vector.load %arg5[%385, %c0_104, %c0_105] : memref<8x8x32xf32, #tpu.memory_space<vmem>>, vector<1x8x32xf32>
    %387 = vector.shape_cast %386 : vector<1x8x32xf32> to vector<8x32xf32>
    %388 = vector.shape_cast %384 : vector<8x32xf32> to vector<1x8x32xf32>
    tpu.vector_store %arg5[%385, %c0_104, %c0_105], %388 {strides = array<i32>} : memref<8x8x32xf32, #tpu.memory_space<vmem>>, vector<1x8x32xf32>,
    %c6_i32 = arith.constant 6 : i32
    %389 = tpu.concatenate %384, %382 in 1 : vector<8x32xf32>, vector<8x32xf32> -> vector<8x64xf32>
    %390 = arith.truncf %389 : vector<8x64xf32> to vector<8x64xbf16>
    %c0_106 = arith.constant 0 : index
    %c0_107 = arith.constant 0 : index
    %391 = vector.load %arg2[%c0_106, %c0_107] : memref<64x160xbf16, #tpu.memory_space<vmem>>, vector<64x160xbf16>
    %cst_108 = arith.constant dense<0.000000e+00> : vector<8x160xf32>
    %392 = tpu.matmul %390, %391, %cst_108 {dimension_numbers = #tpu.dot_dimension_numbers<[1], [0], [0], [1], [0, 0, 1, 1], [], []>} : vector<8x64xbf16>, vector<64x160xbf16>, vector<8x160xf32> -> vector<8x160xf32>
    %393 = arith.index_cast %c6_i32 : i32 to index
    %c0_109 = arith.constant 0 : index
    %c0_110 = arith.constant 0 : index
    %394 = vector.load %arg1[%393, %c0_109, %c0_110] : memref<8x8x160xbf16, #tpu.memory_space<vmem>>, vector<1x8x160xbf16>
    %395 = vector.shape_cast %394 : vector<1x8x160xbf16> to vector<8x160xbf16>
    %396 = arith.extf %395 : vector<8x160xbf16> to vector<8x160xf32>
    %397 = vector.extract_strided_slice %392 {offsets = [0, 128], sizes = [8, 32], strides = [1, 1]} : vector<8x160xf32> to vector<8x32xf32>
    %398 = vector.extract_strided_slice %396 {offsets = [0, 128], sizes = [8, 32], strides = [1, 1]} : vector<8x160xf32> to vector<8x32xf32>
    %399 = arith.addf %397, %398 : vector<8x32xf32>
    %400 = math.tanh %399 : vector<8x32xf32>
    %c0_111 = arith.constant 0 : index
    %c0_112 = arith.constant 0 : index
    %401 = vector.load %arg3[%c0_111, %c0_112] : memref<1x32xf32, #tpu.memory_space<vmem>>, vector<1x32xf32>
    %402 = vector.broadcast %401 : vector<1x32xf32> to vector<8x32xf32>
    %403 = arith.mulf %400, %402 : vector<8x32xf32>
    %cst_113 = arith.constant dense<0.000000e+00> : vector<8xf32>
    %404 = vector.multi_reduction <add>, %403, %cst_113 [1] : vector<8x32xf32> to vector<8xf32>
    %405 = vector.shape_cast %404 : vector<8xf32> to vector<8x1xf32>
    %cst_114 = arith.constant dense<0xFF800000> : vector<1xf32>
    %406 = vector.multi_reduction <maximumf>, %405, %cst_114 [0] : vector<8x1xf32> to vector<1xf32>
    %407 = vector.shape_cast %406 : vector<1xf32> to vector<1x1xf32>
    %408 = vector.broadcast %407 : vector<1x1xf32> to vector<8x1xf32>
    %409 = arith.subf %405, %408 : vector<8x1xf32>
    %410 = math.exp %409 : vector<8x1xf32>
    %cst_115 = arith.constant dense<0.000000e+00> : vector<1xf32>
    %411 = vector.multi_reduction <add>, %410, %cst_115 [0] : vector<8x1xf32> to vector<1xf32>
    %412 = vector.shape_cast %411 : vector<1xf32> to vector<1x1xf32>
    %413 = tpu.reciprocal %412 {approx = true} : vector<1x1xf32> -> vector<1x1xf32>
    %414 = vector.broadcast %413 : vector<1x1xf32> to vector<8x1xf32>
    %415 = arith.mulf %410, %414 : vector<8x1xf32>
    %416 = vector.extract_strided_slice %396 {offsets = [0, 0], sizes = [8, 128], strides = [1, 1]} : vector<8x160xf32> to vector<8x128xf32>
    %417 = vector.broadcast %415 : vector<8x1xf32> to vector<8x128xf32>
    %418 = arith.mulf %417, %416 : vector<8x128xf32>
    %419 = vector.extract_strided_slice %392 {offsets = [0, 0], sizes = [8, 128], strides = [1, 1]} : vector<8x160xf32> to vector<8x128xf32>
    %420 = arith.addf %418, %419 : vector<8x128xf32>
    %c0_116 = arith.constant 0 : index
    %c0_117 = arith.constant 0 : index
    %421 = vector.load %arg4[%c0_116, %c0_117] : memref<1x128xf32, #tpu.memory_space<vmem>>, vector<1x128xf32>
    %422 = vector.broadcast %421 : vector<1x128xf32> to vector<8x128xf32>
    %423 = arith.addf %420, %422 : vector<8x128xf32>
    %424 = vector.extract_strided_slice %423 {offsets = [0, 0], sizes = [8, 32], strides = [1, 1]} : vector<8x128xf32> to vector<8x32xf32>
    %425 = arith.negf %424 : vector<8x32xf32>
    %426 = math.exp %425 : vector<8x32xf32>
    %cst_118 = arith.constant 1.000000e+00 : f32
    %427 = vector.broadcast %cst_118 : f32 to vector<8x32xf32>
    %428 = arith.addf %427, %426 : vector<8x32xf32>
    %429 = arith.divf %427, %428 : vector<8x32xf32>
    %430 = vector.extract_strided_slice %423 {offsets = [0, 32], sizes = [8, 32], strides = [1, 1]} : vector<8x128xf32> to vector<8x32xf32>
    %431 = arith.negf %430 : vector<8x32xf32>
    %432 = math.exp %431 : vector<8x32xf32>
    %cst_119 = arith.constant 1.000000e+00 : f32
    %433 = vector.broadcast %cst_119 : f32 to vector<8x32xf32>
    %434 = arith.addf %433, %432 : vector<8x32xf32>
    %435 = arith.divf %433, %434 : vector<8x32xf32>
    %436 = vector.extract_strided_slice %423 {offsets = [0, 64], sizes = [8, 32], strides = [1, 1]} : vector<8x128xf32> to vector<8x32xf32>
    %437 = math.tanh %436 : vector<8x32xf32>
    %438 = vector.extract_strided_slice %423 {offsets = [0, 96], sizes = [8, 32], strides = [1, 1]} : vector<8x128xf32> to vector<8x32xf32>
    %439 = arith.negf %438 : vector<8x32xf32>
    %440 = math.exp %439 : vector<8x32xf32>
    %cst_120 = arith.constant 1.000000e+00 : f32
    %441 = vector.broadcast %cst_120 : f32 to vector<8x32xf32>
    %442 = arith.addf %441, %440 : vector<8x32xf32>
    %443 = arith.divf %441, %442 : vector<8x32xf32>
    %444 = arith.mulf %435, %382 : vector<8x32xf32>
    %445 = arith.mulf %429, %437 : vector<8x32xf32>
    %446 = arith.addf %444, %445 : vector<8x32xf32>
    %447 = math.tanh %446 : vector<8x32xf32>
    %448 = arith.mulf %443, %447 : vector<8x32xf32>
    %449 = arith.index_cast %c6_i32 : i32 to index
    %c0_121 = arith.constant 0 : index
    %c0_122 = arith.constant 0 : index
    %450 = vector.load %arg5[%449, %c0_121, %c0_122] : memref<8x8x32xf32, #tpu.memory_space<vmem>>, vector<1x8x32xf32>
    %451 = vector.shape_cast %450 : vector<1x8x32xf32> to vector<8x32xf32>
    %452 = vector.shape_cast %448 : vector<8x32xf32> to vector<1x8x32xf32>
    tpu.vector_store %arg5[%449, %c0_121, %c0_122], %452 {strides = array<i32>} : memref<8x8x32xf32, #tpu.memory_space<vmem>>, vector<1x8x32xf32>,
    %c7_i32 = arith.constant 7 : i32
    %453 = tpu.concatenate %448, %446 in 1 : vector<8x32xf32>, vector<8x32xf32> -> vector<8x64xf32>
    %454 = arith.truncf %453 : vector<8x64xf32> to vector<8x64xbf16>
    %c0_123 = arith.constant 0 : index
    %c0_124 = arith.constant 0 : index
    %455 = vector.load %arg2[%c0_123, %c0_124] : memref<64x160xbf16, #tpu.memory_space<vmem>>, vector<64x160xbf16>
    %cst_125 = arith.constant dense<0.000000e+00> : vector<8x160xf32>
    %456 = tpu.matmul %454, %455, %cst_125 {dimension_numbers = #tpu.dot_dimension_numbers<[1], [0], [0], [1], [0, 0, 1, 1], [], []>} : vector<8x64xbf16>, vector<64x160xbf16>, vector<8x160xf32> -> vector<8x160xf32>
    %457 = arith.index_cast %c7_i32 : i32 to index
    %c0_126 = arith.constant 0 : index
    %c0_127 = arith.constant 0 : index
    %458 = vector.load %arg1[%457, %c0_126, %c0_127] : memref<8x8x160xbf16, #tpu.memory_space<vmem>>, vector<1x8x160xbf16>
    %459 = vector.shape_cast %458 : vector<1x8x160xbf16> to vector<8x160xbf16>
    %460 = arith.extf %459 : vector<8x160xbf16> to vector<8x160xf32>
    %461 = vector.extract_strided_slice %456 {offsets = [0, 128], sizes = [8, 32], strides = [1, 1]} : vector<8x160xf32> to vector<8x32xf32>
    %462 = vector.extract_strided_slice %460 {offsets = [0, 128], sizes = [8, 32], strides = [1, 1]} : vector<8x160xf32> to vector<8x32xf32>
    %463 = arith.addf %461, %462 : vector<8x32xf32>
    %464 = math.tanh %463 : vector<8x32xf32>
    %c0_128 = arith.constant 0 : index
    %c0_129 = arith.constant 0 : index
    %465 = vector.load %arg3[%c0_128, %c0_129] : memref<1x32xf32, #tpu.memory_space<vmem>>, vector<1x32xf32>
    %466 = vector.broadcast %465 : vector<1x32xf32> to vector<8x32xf32>
    %467 = arith.mulf %464, %466 : vector<8x32xf32>
    %cst_130 = arith.constant dense<0.000000e+00> : vector<8xf32>
    %468 = vector.multi_reduction <add>, %467, %cst_130 [1] : vector<8x32xf32> to vector<8xf32>
    %469 = vector.shape_cast %468 : vector<8xf32> to vector<8x1xf32>
    %cst_131 = arith.constant dense<0xFF800000> : vector<1xf32>
    %470 = vector.multi_reduction <maximumf>, %469, %cst_131 [0] : vector<8x1xf32> to vector<1xf32>
    %471 = vector.shape_cast %470 : vector<1xf32> to vector<1x1xf32>
    %472 = vector.broadcast %471 : vector<1x1xf32> to vector<8x1xf32>
    %473 = arith.subf %469, %472 : vector<8x1xf32>
    %474 = math.exp %473 : vector<8x1xf32>
    %cst_132 = arith.constant dense<0.000000e+00> : vector<1xf32>
    %475 = vector.multi_reduction <add>, %474, %cst_132 [0] : vector<8x1xf32> to vector<1xf32>
    %476 = vector.shape_cast %475 : vector<1xf32> to vector<1x1xf32>
    %477 = tpu.reciprocal %476 {approx = true} : vector<1x1xf32> -> vector<1x1xf32>
    %478 = vector.broadcast %477 : vector<1x1xf32> to vector<8x1xf32>
    %479 = arith.mulf %474, %478 : vector<8x1xf32>
    %480 = vector.extract_strided_slice %460 {offsets = [0, 0], sizes = [8, 128], strides = [1, 1]} : vector<8x160xf32> to vector<8x128xf32>
    %481 = vector.broadcast %479 : vector<8x1xf32> to vector<8x128xf32>
    %482 = arith.mulf %481, %480 : vector<8x128xf32>
    %483 = vector.extract_strided_slice %456 {offsets = [0, 0], sizes = [8, 128], strides = [1, 1]} : vector<8x160xf32> to vector<8x128xf32>
    %484 = arith.addf %482, %483 : vector<8x128xf32>
    %c0_133 = arith.constant 0 : index
    %c0_134 = arith.constant 0 : index
    %485 = vector.load %arg4[%c0_133, %c0_134] : memref<1x128xf32, #tpu.memory_space<vmem>>, vector<1x128xf32>
    %486 = vector.broadcast %485 : vector<1x128xf32> to vector<8x128xf32>
    %487 = arith.addf %484, %486 : vector<8x128xf32>
    %488 = vector.extract_strided_slice %487 {offsets = [0, 0], sizes = [8, 32], strides = [1, 1]} : vector<8x128xf32> to vector<8x32xf32>
    %489 = arith.negf %488 : vector<8x32xf32>
    %490 = math.exp %489 : vector<8x32xf32>
    %cst_135 = arith.constant 1.000000e+00 : f32
    %491 = vector.broadcast %cst_135 : f32 to vector<8x32xf32>
    %492 = arith.addf %491, %490 : vector<8x32xf32>
    %493 = arith.divf %491, %492 : vector<8x32xf32>
    %494 = vector.extract_strided_slice %487 {offsets = [0, 32], sizes = [8, 32], strides = [1, 1]} : vector<8x128xf32> to vector<8x32xf32>
    %495 = arith.negf %494 : vector<8x32xf32>
    %496 = math.exp %495 : vector<8x32xf32>
    %cst_136 = arith.constant 1.000000e+00 : f32
    %497 = vector.broadcast %cst_136 : f32 to vector<8x32xf32>
    %498 = arith.addf %497, %496 : vector<8x32xf32>
    %499 = arith.divf %497, %498 : vector<8x32xf32>
    %500 = vector.extract_strided_slice %487 {offsets = [0, 64], sizes = [8, 32], strides = [1, 1]} : vector<8x128xf32> to vector<8x32xf32>
    %501 = math.tanh %500 : vector<8x32xf32>
    %502 = vector.extract_strided_slice %487 {offsets = [0, 96], sizes = [8, 32], strides = [1, 1]} : vector<8x128xf32> to vector<8x32xf32>
    %503 = arith.negf %502 : vector<8x32xf32>
    %504 = math.exp %503 : vector<8x32xf32>
    %cst_137 = arith.constant 1.000000e+00 : f32
    %505 = vector.broadcast %cst_137 : f32 to vector<8x32xf32>
    %506 = arith.addf %505, %504 : vector<8x32xf32>
    %507 = arith.divf %505, %506 : vector<8x32xf32>
    %508 = arith.mulf %499, %446 : vector<8x32xf32>
    %509 = arith.mulf %493, %501 : vector<8x32xf32>
    %510 = arith.addf %508, %509 : vector<8x32xf32>
    %511 = math.tanh %510 : vector<8x32xf32>
    %512 = arith.mulf %507, %511 : vector<8x32xf32>
    %513 = arith.index_cast %c7_i32 : i32 to index
    %c0_138 = arith.constant 0 : index
    %c0_139 = arith.constant 0 : index
    %514 = vector.load %arg5[%513, %c0_138, %c0_139] : memref<8x8x32xf32, #tpu.memory_space<vmem>>, vector<1x8x32xf32>
    %515 = vector.shape_cast %514 : vector<1x8x32xf32> to vector<8x32xf32>
    %516 = vector.shape_cast %512 : vector<8x32xf32> to vector<1x8x32xf32>
    tpu.vector_store %arg5[%513, %c0_138, %c0_139], %516 {strides = array<i32>} : memref<8x8x32xf32, #tpu.memory_space<vmem>>, vector<1x8x32xf32>,
    %c8_i32 = arith.constant 8 : i32
    %c0_140 = arith.constant 0 : index
    %c0_141 = arith.constant 0 : index
    %517 = vector.load %arg6[%c0_140, %c0_141] : memref<8x32xf32, #tpu.memory_space<vmem>>, vector<8x32xf32>
    tpu.vector_store %arg6[%c0_140, %c0_141], %512 {strides = array<i32>} : memref<8x32xf32, #tpu.memory_space<vmem>>, vector<8x32xf32>,
    %c0_142 = arith.constant 0 : index
    %c0_143 = arith.constant 0 : index
    %518 = vector.load %arg7[%c0_142, %c0_143] : memref<8x32xf32, #tpu.memory_space<vmem>>, vector<8x32xf32>
    tpu.vector_store %arg7[%c0_142, %c0_143], %510 {strides = array<i32>} : memref<8x32xf32, #tpu.memory_space<vmem>>, vector<8x32xf32>,
    return
  }
  func.func @transform_0(%arg0: i32) -> (i32, i32, i32) {
    %c0_i32 = arith.constant 0 : i32
    %c0_i32_0 = arith.constant 0 : i32
    %c0_i32_1 = arith.constant 0 : i32
    return %arg0, %c0_i32, %c0_i32_0 : i32, i32, i32
  }
  func.func @transform_1(%arg0: i32) -> (i32, i32) {
    %c0_i32 = arith.constant 0 : i32
    %c0_i32_0 = arith.constant 0 : i32
    %c0_i32_1 = arith.constant 0 : i32
    return %c0_i32, %c0_i32_0 : i32, i32
  }
  func.func @transform_2(%arg0: i32) -> (i32, i32) {
    %c0_i32 = arith.constant 0 : i32
    %c0_i32_0 = arith.constant 0 : i32
    %c0_i32_1 = arith.constant 0 : i32
    return %c0_i32, %c0_i32_0 : i32, i32
  }
  func.func @transform_3(%arg0: i32) -> (i32, i32) {
    %c0_i32 = arith.constant 0 : i32
    %c0_i32_0 = arith.constant 0 : i32
    %c0_i32_1 = arith.constant 0 : i32
    return %c0_i32, %c0_i32_0 : i32, i32
  }
  func.func @transform_4(%arg0: i32) -> (i32, i32, i32) {
    %c0_i32 = arith.constant 0 : i32
    %c0_i32_0 = arith.constant 0 : i32
    %c0_i32_1 = arith.constant 0 : i32
    return %arg0, %c0_i32, %c0_i32_0 : i32, i32, i32
  }
}

</mosaic_0001>

<llo_original>
// kernel: att_forward.2
$region0: #{att_forward.2}
  #allocation0 [shape = 'u32[]', space=smem, size = 0x4, offset = 0x4, fixed_abs, tag = 'smem constant byte address 0x4 - core index']
  #allocation1 [shape = 'u32[72,128]{1,0:T(1,128)}', space=vmem, size = 0x9000, scoped, tag = 'internal scratch']
  %s0 = inlined_call_operand.vmem [shape: bf16[64,32], index: 0, kind: input, shape index: {}]
  %s1 = inlined_call_operand.vmem [shape: bf16[32,160], index: 1, kind: input, shape index: {}]
  %s2 = inlined_call_operand.vmem [shape: f32[1,160], index: 2, kind: input, shape index: {}]
  %s3 = inlined_call_operand.vmem [shape: bf16[64,160], index: 3, kind: output, shape index: {}]
  %s4 = sld [smem:[#allocation0]]
  $region22: #{att_forward.2} parent=0
    _
  %s6 = ssub.s32 1, %s4
  %s7 = scalar_select 0, %s6, %s4
  // Predicated region
  $region2: #{att_forward.2} parent=0 // pred_check
    _
  $region3: #{att_forward.2} parent=0 // pred_check_branch
    %9 = sbr.rel (0) target = $region5
  $region4: #{att_forward.2} parent=0 // pred_region
    _
  $region5: #{att_forward.2} parent=0 // pred_fallthru
    _
  // Predicated region
  $region6: #{att_forward.2} parent=0 // pred_check
    _
  $region7: #{att_forward.2} parent=0 // pred_check_branch
    %11 = sbr.rel (0) target = $region9
  $region8: #{att_forward.2} parent=0 // pred_region
    _
  $region9: #{att_forward.2} parent=0 // pred_fallthru
    _
  // Predicated region
  $region10: #{att_forward.2} parent=0 // pred_check
    _
  $region11: #{att_forward.2} parent=0 // pred_check_branch
    %13 = sbr.rel (0) target = $region13
  $region12: #{att_forward.2} parent=0 // pred_region
    _
  $region13: #{att_forward.2} parent=0 // pred_fallthru
    _
  %v15 = vld [vmem:[%s0] sm:$0xf]
  %v16 = vld [vmem:[%s0 + $0x4] sm:$0xf]
  %v17 = vld [vmem:[%s0 + $0x8] sm:$0xf]
  %v18 = vld [vmem:[%s0 + $0xc] sm:$0xf]
  %v19 = vld [vmem:[%s0 + $0x10] sm:$0xf]
  %v20 = vld [vmem:[%s0 + $0x14] sm:$0xf]
  %v21 = vld [vmem:[%s0 + $0x18] sm:$0xf]
  %v22 = vld [vmem:[%s0 + $0x1c] sm:$0xf]
  %v23 = vld [vmem:[%s1] sm:$0xff]
  %v24 = vld [vmem:[%s1 + $0x8] sm:$0xff]
  %v25 = vld [vmem:[%s1 + $0x10] sm:$0xff]
  %v26 = vld [vmem:[%s1 + $0x18] sm:$0xff]
  %v27 = vld [vmem:[%s2] sm:$0x3]
  %v29 = vperm.slane %v27, 0
  %v30 = vperm.slane %v27, 1
  %v41 = vunpack.c.l.b16 %v15
  %v42 = vunpack.c.l.b16 %v16
  %v43 = vunpack.c.l.b16 %v17
  %v44 = vunpack.c.l.b16 %v18
  %v45 = vunpack.c.l.b16 %v19
  %v46 = vunpack.c.l.b16 %v20
  %v47 = vunpack.c.l.b16 %v21
  %v48 = vunpack.c.l.b16 %v22
  %v49 = vpack.c.b16 %v42, %v41
  %v50 = vpack.c.b16 %v44, %v43
  %v51 = vpack.c.b16 %v46, %v45
  %v52 = vpack.c.b16 %v48, %v47
  %v57 = vunpack.c.l.b16 %v23
  %v58 = vunpack.c.h.b16 %v23
  %v59 = vunpack.c.l.b16 %v24
  %v60 = vunpack.c.h.b16 %v24
  %v61 = vunpack.c.l.b16 %v25
  %v62 = vunpack.c.h.b16 %v25
  %v63 = vunpack.c.l.b16 %v26
  %v64 = vunpack.c.h.b16 %v26
  %v65 = vpack.c.b16 %v59, %v57
  %v66 = vpack.c.b16 %v60, %v58
  %v67 = vpack.c.b16 %v63, %v61
  %v68 = vpack.c.b16 %v64, %v62
  %vm73 = vcmask 261120
  %v75 = vsel %vm73, %v49, 0
  %v78 = vsel %vm73, %v50, 0
  %v81 = vsel %vm73, %v51, 0
  %v84 = vsel %vm73, %v52, 0
  %86 = vmatpush.bf16.msra.mxu0 0
  %87 = vmatpush.bf16.msra.mxu0 0
  %88 = vmatpush.bf16.msra.mxu0 0
  %89 = vmatpush.bf16.msra.mxu0 0
  %90 = vmatpush.bf16.msra.mxu0 0
  %91 = vmatpush.bf16.msra.mxu0 0
  %92 = vmatpush.bf16.msra.mxu0 %v67
  %93 = vmatpush.bf16.msra.mxu0 %v65
  %94 = vmatmul.bf16.gmra.mxu0 %v75
  %v95 = vpop.f32.mrf.mxu0
  %v96 = vadd.f32 %v29, %v95
  %v97 = vpop.f32.mrf.mxu0
  %v98 = vadd.f32 %v29, %v97
  %99 = vmatmul.bf16.gmra.mxu0 %v78
  %v100 = vpop.f32.mrf.mxu0
  %v101 = vadd.f32 %v29, %v100
  %v102 = vpop.f32.mrf.mxu0
  %v103 = vadd.f32 %v29, %v102
  %104 = vmatmul.bf16.gmra.mxu0 %v81
  %v105 = vpop.f32.mrf.mxu0
  %v106 = vadd.f32 %v29, %v105
  %v107 = vpop.f32.mrf.mxu0
  %v108 = vadd.f32 %v29, %v107
  %109 = vmatmul.bf16.gmra.mxu0 %v84
  %v110 = vpop.f32.mrf.mxu0
  %v111 = vadd.f32 %v29, %v110
  %v112 = vpop.f32.mrf.mxu0
  %v113 = vadd.f32 %v29, %v112
  %114 = vdwg.mxu0
  %115 = vmatpush.bf16.msra.mxu0 0
  %116 = vmatpush.bf16.msra.mxu0 0
  %117 = vmatpush.bf16.msra.mxu0 0
  %118 = vmatpush.bf16.msra.mxu0 0
  %119 = vmatpush.bf16.msra.mxu0 0
  %120 = vmatpush.bf16.msra.mxu0 0
  %121 = vmatpush.bf16.msra.mxu0 %v68
  %122 = vmatpush.bf16.msra.mxu0 %v66
  %123 = vmatmul.bf16.gmra.mxu0 %v75
  %v124 = vpop.f32.mrf.mxu0
  %v125 = vadd.f32 %v30, %v124
  %v126 = vpop.f32.mrf.mxu0
  %v127 = vadd.f32 %v30, %v126
  %128 = vmatmul.bf16.gmra.mxu0 %v78
  %v129 = vpop.f32.mrf.mxu0
  %v130 = vadd.f32 %v30, %v129
  %v131 = vpop.f32.mrf.mxu0
  %v132 = vadd.f32 %v30, %v131
  %133 = vmatmul.bf16.gmra.mxu0 %v81
  %v134 = vpop.f32.mrf.mxu0
  %v135 = vadd.f32 %v30, %v134
  %v136 = vpop.f32.mrf.mxu0
  %v137 = vadd.f32 %v30, %v136
  %138 = vmatmul.bf16.gmra.mxu0 %v84
  %v139 = vpop.f32.mrf.mxu0
  %v140 = vadd.f32 %v30, %v139
  %v141 = vpop.f32.mrf.mxu0
  %v142 = vadd.f32 %v30, %v141
  %143 = vdwg.mxu0
  %v144 = vpack.c.bf16 %v125, %v96
  %v145 = vpack.c.bf16 %v127, %v98
  %v146 = vpack.c.bf16 %v130, %v101
  %v147 = vpack.c.bf16 %v132, %v103
  %v148 = vpack.c.bf16 %v135, %v106
  %v149 = vpack.c.bf16 %v137, %v108
  %v150 = vpack.c.bf16 %v140, %v111
  %v151 = vpack.c.bf16 %v142, %v113
  %vm152 = vcmask 1043456
  %vm153 = vcmask 261124
  %vm154 = vmor %vm153, %vm152
  %155 = vst.msk [vmem:[%s3] sm:$0xff] %vm154, %v144
  %156 = vst.msk [vmem:[%s3 + $0x8] sm:$0xff] %vm154, %v145
  %157 = vst.msk [vmem:[%s3 + $0x10] sm:$0xff] %vm154, %v146
  %158 = vst.msk [vmem:[%s3 + $0x18] sm:$0xff] %vm154, %v147
  %159 = vst.msk [vmem:[%s3 + $0x20] sm:$0xff] %vm154, %v148
  %160 = vst.msk [vmem:[%s3 + $0x28] sm:$0xff] %vm154, %v149
  %161 = vst.msk [vmem:[%s3 + $0x30] sm:$0xff] %vm154, %v150
  %162 = vst.msk [vmem:[%s3 + $0x38] sm:$0xff] %vm154, %v151
  // Predicated region
  $region14: #{att_forward.2} parent=0 // pred_check
    _
  $region15: #{att_forward.2} parent=0 // pred_check_branch
    %164 = sbr.rel (0) target = $region17
  $region16: #{att_forward.2} parent=0 // pred_region
    _
  $region17: #{att_forward.2} parent=0 // pred_fallthru
    _
  // Predicated region
  $region18: #{att_forward.2} parent=0 // pred_check
    _
  $region19: #{att_forward.2} parent=0 // pred_check_branch
    %166 = sbr.rel (0) target = $region21
  $region20: #{att_forward.2} parent=0 // pred_region
    _
  $region21: #{att_forward.2} parent=0 // pred_fallthru
    _

// kernel: att_forward.3
$region0: #{att_forward.3}
  #allocation0 [shape = 'u32[]', space=smem, size = 0x4, offset = 0x4, fixed_abs, tag = 'smem constant byte address 0x4 - core index']
  #allocation1 [shape = 'u32[72,128]{1,0:T(1,128)}', space=vmem, size = 0x9000, scoped, tag = 'internal scratch']
  #allocation2 [shape = 'f32[8,32]{1,0:T(8,128)}', space=vmem, size = 0x1000, scoped, tag = 'scratch operand']
  #allocation3 [shape = 'f32[8,32]{1,0:T(8,128)}', space=vmem, size = 0x1000, scoped, tag = 'scratch operand']
  %s0 = inlined_call_operand.vmem [shape: bf16[8,8,160], index: 0, kind: input, shape index: {}]
  %s1 = inlined_call_operand.vmem [shape: bf16[64,160], index: 1, kind: input, shape index: {}]
  %s2 = inlined_call_operand.vmem [shape: f32[1,32], index: 2, kind: input, shape index: {}]
  %s3 = inlined_call_operand.vmem [shape: f32[1,128], index: 3, kind: input, shape index: {}]
  %s4 = inlined_call_operand.hbm [shape: f32[8,8,32], index: 4, kind: output, shape index: {}]
  %s5 = sld [smem:[#allocation0]]
  $region30: #{att_forward.3} parent=0
    _
  %s7 = ssub.s32 1, %s5
  %s8 = scalar_select 0, %s7, %s5
  $region1: #{att_forward.3} parent=0
    #allocation4 [shape = 'u8[32768]{0}', space=vmem, size = 0x8000, scoped, tag = 'output window, operand 0, single buffered']
    #allocation5 [shape = 's32[1]{0}', space=sflag, size = 0x4, scoped, tag = 'scoped memory for att_forward.3']
    %9 = vsyncpa [#allocation5], 0
    // Predicated region
    $region2: #{att_forward.3} parent=1 // pred_check
      _
    $region3: #{att_forward.3} parent=1 // pred_check_branch
      %11 = sbr.rel (0) target = $region5
    $region4: #{att_forward.3} parent=1 // pred_region
      _
    $region5: #{att_forward.3} parent=1 // pred_fallthru
      _
    // Predicated region
    $region6: #{att_forward.3} parent=1 // pred_check
      _
    $region7: #{att_forward.3} parent=1 // pred_check_branch
      %13 = sbr.rel (0) target = $region9
    $region8: #{att_forward.3} parent=1 // pred_region
      _
    $region9: #{att_forward.3} parent=1 // pred_fallthru
      _
    // Predicated region
    $region10: #{att_forward.3} parent=1 // pred_check
      _
    $region11: #{att_forward.3} parent=1 // pred_check_branch
      %15 = sbr.rel (0) target = $region13
    $region12: #{att_forward.3} parent=1 // pred_region
      _
    $region13: #{att_forward.3} parent=1 // pred_fallthru
      _
    // Predicated region
    $region14: #{att_forward.3} parent=1 // pred_check
      _
    $region15: #{att_forward.3} parent=1 // pred_check_branch
      %17 = sbr.rel (0) target = $region17
    $region16: #{att_forward.3} parent=1 // pred_region
      _
    $region17: #{att_forward.3} parent=1 // pred_fallthru
      _
    %p19 = scmp.eq.s32.totalorder 0, 0
    // Predicated region
    $region18: #{att_forward.3} parent=1 // pred_check
      %p20 = pneg %p19
    $region19: #{att_forward.3} parent=1 // pred_check_branch
      %22 = sbr.rel (%p20) target = $region21
    $region20: #{att_forward.3} parent=1 // pred_region
      %vm23 = vcmask 261120
      %24 = vst.msk [vmem:[#allocation2] sm:$0xff] %vm23, 0.0
      %25 = vst.msk [vmem:[#allocation3] sm:$0xff] %vm23, 0.0
    $region21: #{att_forward.3} parent=1 // pred_fallthru
      _
    %v26 = vld [vmem:[#allocation2] sm:$0xff]
    %v27 = vld [vmem:[#allocation3] sm:$0xff]
    %29 = vrot.lane.b32.xlu0 %v27, 32
    %v30 = vpop.permute.xlu0 %29
    %vm32 = vcmask 261120
    %v33 = vsel %vm32, %v26, %v30
    %v34 = vpack.c.bf16 %v33, %v33
    %v35 = vld [vmem:[%s1] sm:$0xff]
    %v36 = vld [vmem:[%s1 + $0x8] sm:$0xff]
    %v37 = vld [vmem:[%s1 + $0x10] sm:$0xff]
    %v38 = vld [vmem:[%s1 + $0x18] sm:$0xff]
    %v39 = vld [vmem:[%s1 + $0x20] sm:$0xff]
    %v40 = vld [vmem:[%s1 + $0x28] sm:$0xff]
    %v41 = vld [vmem:[%s1 + $0x30] sm:$0xff]
    %v42 = vld [vmem:[%s1 + $0x38] sm:$0xff]
    %v51 = vunpack.c.l.b16 %v35
    %v52 = vunpack.c.h.b16 %v35
    %v53 = vunpack.c.l.b16 %v36
    %v54 = vunpack.c.h.b16 %v36
    %v55 = vunpack.c.l.b16 %v37
    %v56 = vunpack.c.h.b16 %v37
    %v57 = vunpack.c.l.b16 %v38
    %v58 = vunpack.c.h.b16 %v38
    %v59 = vunpack.c.l.b16 %v39
    %v60 = vunpack.c.h.b16 %v39
    %v61 = vunpack.c.l.b16 %v40
    %v62 = vunpack.c.h.b16 %v40
    %v63 = vunpack.c.l.b16 %v41
    %v64 = vunpack.c.h.b16 %v41
    %v65 = vunpack.c.l.b16 %v42
    %v66 = vunpack.c.h.b16 %v42
    %v67 = vpack.c.b16 %v53, %v51
    %v68 = vpack.c.b16 %v54, %v52
    %v69 = vpack.c.b16 %v57, %v55
    %v70 = vpack.c.b16 %v58, %v56
    %v71 = vpack.c.b16 %v61, %v59
    %v72 = vpack.c.b16 %v62, %v60
    %v73 = vpack.c.b16 %v65, %v63
    %v74 = vpack.c.b16 %v66, %v64
    %vm83 = vcmask 523264
    %v85 = vsel %vm83, %v34, 0
    %87 = vmatpush.bf16.msra.mxu0 0
    %88 = vmatpush.bf16.msra.mxu0 0
    %89 = vmatpush.bf16.msra.mxu0 0
    %90 = vmatpush.bf16.msra.mxu0 0
    %91 = vmatpush.bf16.msra.mxu0 %v73
    %92 = vmatpush.bf16.msra.mxu0 %v71
    %93 = vmatpush.bf16.msra.mxu0 %v69
    %94 = vmatpush.bf16.msra.mxu0 %v67
    %95 = vmatmul.bf16.gmra.mxu0 %v85
    %v96 = vpop.f32.mrf.mxu0
    %v97 = vadd.f32 0.0, %v96
    %v98 = vpop.f32.mrf.mxu0
    %99 = vdwg.mxu0
    %100 = vmatpush.bf16.msra.mxu0 0
    %101 = vmatpush.bf16.msra.mxu0 0
    %102 = vmatpush.bf16.msra.mxu0 0
    %103 = vmatpush.bf16.msra.mxu0 0
    %104 = vmatpush.bf16.msra.mxu0 %v74
    %105 = vmatpush.bf16.msra.mxu0 %v72
    %106 = vmatpush.bf16.msra.mxu0 %v70
    %107 = vmatpush.bf16.msra.mxu0 %v68
    %108 = vmatmul.bf16.gmra.mxu0 %v85
    %v109 = vpop.f32.mrf.mxu0
    %v110 = vadd.f32 0.0, %v109
    %v111 = vpop.f32.mrf.mxu0
    %112 = vdwg.mxu0
    %v113 = vld [vmem:[%s0] sm:$0xff]
    %v114 = vunpack.c.l.bf16 %v113
    %v115 = vunpack.c.h.bf16 %v113
    %v116 = vadd.f32 %v110, %v115
    %v117 = vtanh.pop %v116
    %v118 = vld [vmem:[%s2] sm:$0x1]
    %v120 = vperm.slane %v118, 0
    %v122 = vmul.f32 %v117, %v120
    %v123 = vsel %vm32, %v122, 0.0
    %124 = vadd.xlane.f32.xlu0 %v123
    %v125 = vpop.xlane.xlu0 %124
    %v126 = vrot.slane %v125, 4
    %v127 = vmax.f32 %v125, %v126
    %v128 = vrot.slane %v127, 2
    %v129 = vmax.f32 %v127, %v128
    %v130 = vrot.slane %v129, 1
    %v131 = vmax.f32 %v129, %v130
    %v132 = vsub.f32 %v125, %v131
    %v133 = vmul.f32 %v132, 1.442695
    %v134 = vpow.pop %v133
    %v135 = vrot.slane %v134, 4
    %v136 = vadd.f32 %v134, %v135
    %v137 = vrot.slane %v136, 2
    %v138 = vadd.f32 %v136, %v137
    %v139 = vrot.slane %v138, 1
    %v140 = vadd.f32 %v138, %v139
    %v141 = vrcp.pop %v140
    %v142 = vmul.f32 %v134, %v141
    %v143 = vmul.f32 %v142, %v114
    %v144 = vadd.f32 %v143, %v97
    %v145 = vld [vmem:[%s3] sm:$0x1]
    %v147 = vperm.slane %v145, 0
    %v149 = vadd.f32 %v144, %v147
    %v150 = vxor.u32 %v149, 2147483648
    %v151 = vmul.f32 %v150, 1.442695
    %v152 = vpow.pop %v151
    %v153 = vadd.f32 %v152, 1.0
    %v154 = vrcp.pop %v153
    %v155 = vmul.f32 %v153, %v154
    %v156 = vsub.f32 1.0, %v155
    %v157 = vmul.f32 %v154, %v156
    %v158 = vadd.f32 %v154, %v157
    %vm159 = vweird.f32 %v153
    %vm160 = vweird.f32 %v154
    %vm161 = vmor %vm159, %vm160
    %v162 = vsel %vm161, %v154, %v158
    %v163 = vand.u32 2147483647, %v153
    %vm164 = vcmp.eq.f32.partialorder %v163, 8.507059e+37
    %v165 = vand.u32 %v153, 2147483648
    %v166 = vor.u32 1.1754944e-38, %v165
    %v167 = vsel %vm164, %v166, %v162
    %v168 = vmul.f32 1.0, %v167
    %v169 = vtanh.pop %v149
    %v170 = vmul.f32 %v168, %v30
    %172 = vrot.lane.b32.xlu0 %v169, 64
    %v173 = vpop.permute.xlu0 %172
    %v175 = vmul.f32 %v168, %v173
    %177 = vrot.lane.b32.xlu0 %v175, 32
    %v178 = vpop.permute.xlu0 %177
    %v180 = vadd.f32 %v170, %v178
    %v181 = vtanh.pop %v180
    %183 = vrot.lane.b32.xlu0 %v181, 64
    %v184 = vpop.permute.xlu0 %183
    %v186 = vmul.f32 %v168, %v184
    %188 = vrot.lane.b32.xlu0 %v186, 32
    %v189 = vpop.permute.xlu0 %188
    %191 = vst.msk [vmem:[#allocation4] sm:$0xff] %vm32, %v189
    %v192 = vsel %vm32, %v189, %v180
    %v193 = vpack.c.bf16 %v192, %v192
    %v194 = vld [vmem:[%s1] sm:$0xff]
    %v195 = vld [vmem:[%s1 + $0x8] sm:$0xff]
    %v196 = vld [vmem:[%s1 + $0x10] sm:$0xff]
    %v197 = vld [vmem:[%s1 + $0x18] sm:$0xff]
    %v198 = vld [vmem:[%s1 + $0x20] sm:$0xff]
    %v199 = vld [vmem:[%s1 + $0x28] sm:$0xff]
    %v200 = vld [vmem:[%s1 + $0x30] sm:$0xff]
    %v201 = vld [vmem:[%s1 + $0x38] sm:$0xff]
    %v210 = vunpack.c.l.b16 %v194
    %v211 = vunpack.c.h.b16 %v194
    %v212 = vunpack.c.l.b16 %v195
    %v213 = vunpack.c.h.b16 %v195
    %v214 = vunpack.c.l.b16 %v196
    %v215 = vunpack.c.h.b16 %v196
    %v216 = vunpack.c.l.b16 %v197
    %v217 = vunpack.c.h.b16 %v197
    %v218 = vunpack.c.l.b16 %v198
    %v219 = vunpack.c.h.b16 %v198
    %v220 = vunpack.c.l.b16 %v199
    %v221 = vunpack.c.h.b16 %v199
    %v222 = vunpack.c.l.b16 %v200
    %v223 = vunpack.c.h.b16 %v200
    %v224 = vunpack.c.l.b16 %v201
    %v225 = vunpack.c.h.b16 %v201
    %v226 = vpack.c.b16 %v212, %v210
    %v227 = vpack.c.b16 %v213, %v211
    %v228 = vpack.c.b16 %v216, %v214
    %v229 = vpack.c.b16 %v217, %v215
    %v230 = vpack.c.b16 %v220, %v218
    %v231 = vpack.c.b16 %v221, %v219
    %v232 = vpack.c.b16 %v224, %v222
    %v233 = vpack.c.b16 %v225, %v223
    %v243 = vsel %vm83, %v193, 0
    %245 = vmatpush.bf16.msra.mxu0 0
    %246 = vmatpush.bf16.msra.mxu0 0
    %247 = vmatpush.bf16.msra.mxu0 0
    %248 = vmatpush.bf16.msra.mxu0 0
    %249 = vmatpush.bf16.msra.mxu0 %v232
    %250 = vmatpush.bf16.msra.mxu0 %v230
    %251 = vmatpush.bf16.msra.mxu0 %v228
    %252 = vmatpush.bf16.msra.mxu0 %v226
    %253 = vmatmul.bf16.gmra.mxu0 %v243
    %v254 = vpop.f32.mrf.mxu0
    %v255 = vadd.f32 0.0, %v254
    %v256 = vpop.f32.mrf.mxu0
    %257 = vdwg.mxu0
    %258 = vmatpush.bf16.msra.mxu0 0
    %259 = vmatpush.bf16.msra.mxu0 0
    %260 = vmatpush.bf16.msra.mxu0 0
    %261 = vmatpush.bf16.msra.mxu0 0
    %262 = vmatpush.bf16.msra.mxu0 %v233
    %263 = vmatpush.bf16.msra.mxu0 %v231
    %264 = vmatpush.bf16.msra.mxu0 %v229
    %265 = vmatpush.bf16.msra.mxu0 %v227
    %266 = vmatmul.bf16.gmra.mxu0 %v243
    %v267 = vpop.f32.mrf.mxu0
    %v268 = vadd.f32 0.0, %v267
    %v269 = vpop.f32.mrf.mxu0
    %270 = vdwg.mxu0
    %s271 = scalar_lea.vmem %s0, 8
    %v272 = vld [vmem:[%s271] sm:$0xff]
    %v273 = vunpack.c.l.bf16 %v272
    %v274 = vunpack.c.h.bf16 %v272
    %v275 = vadd.f32 %v268, %v274
    %v276 = vtanh.pop %v275
    %v277 = vld [vmem:[%s2] sm:$0x1]
    %v279 = vperm.slane %v277, 0
    %v281 = vmul.f32 %v276, %v279
    %v282 = vsel %vm32, %v281, 0.0
    %283 = vadd.xlane.f32.xlu0 %v282
    %v284 = vpop.xlane.xlu0 %283
    %v285 = vrot.slane %v284, 4
    %v286 = vmax.f32 %v284, %v285
    %v287 = vrot.slane %v286, 2
    %v288 = vmax.f32 %v286, %v287
    %v289 = vrot.slane %v288, 1
    %v290 = vmax.f32 %v288, %v289
    %v291 = vsub.f32 %v284, %v290
    %v292 = vmul.f32 %v291, 1.442695
    %v293 = vpow.pop %v292
    %v294 = vrot.slane %v293, 4
    %v295 = vadd.f32 %v293, %v294
    %v296 = vrot.slane %v295, 2
    %v297 = vadd.f32 %v295, %v296
    %v298 = vrot.slane %v297, 1
    %v299 = vadd.f32 %v297, %v298
    %v300 = vrcp.pop %v299
    %v301 = vmul.f32 %v293, %v300
    %v302 = vmul.f32 %v301, %v273
    %v303 = vadd.f32 %v302, %v255
    %v304 = vld [vmem:[%s3] sm:$0x1]
    %v306 = vperm.slane %v304, 0
    %v308 = vadd.f32 %v303, %v306
    %v309 = vxor.u32 %v308, 2147483648
    %v310 = vmul.f32 %v309, 1.442695
    %v311 = vpow.pop %v310
    %v312 = vadd.f32 %v311, 1.0
    %v313 = vrcp.pop %v312
    %v314 = vmul.f32 %v312, %v313
    %v315 = vsub.f32 1.0, %v314
    %v316 = vmul.f32 %v313, %v315
    %v317 = vadd.f32 %v313, %v316
    %vm318 = vweird.f32 %v312
    %vm319 = vweird.f32 %v313
    %vm320 = vmor %vm318, %vm319
    %v321 = vsel %vm320, %v313, %v317
    %v322 = vand.u32 2147483647, %v312
    %vm323 = vcmp.eq.f32.partialorder %v322, 8.507059e+37
    %v324 = vand.u32 %v312, 2147483648
    %v325 = vor.u32 1.1754944e-38, %v324
    %v326 = vsel %vm323, %v325, %v321
    %v327 = vmul.f32 1.0, %v326
    %v328 = vtanh.pop %v308
    %v329 = vmul.f32 %v327, %v180
    %331 = vrot.lane.b32.xlu0 %v328, 64
    %v332 = vpop.permute.xlu0 %331
    %v334 = vmul.f32 %v327, %v332
    %336 = vrot.lane.b32.xlu0 %v334, 32
    %v337 = vpop.permute.xlu0 %336
    %v339 = vadd.f32 %v329, %v337
    %v340 = vtanh.pop %v339
    %342 = vrot.lane.b32.xlu0 %v340, 64
    %v343 = vpop.permute.xlu0 %342
    %v345 = vmul.f32 %v327, %v343
    %347 = vrot.lane.b32.xlu0 %v345, 32
    %v348 = vpop.permute.xlu0 %347
    %s350 = scalar_lea.vmem [#allocation4], 8
    %351 = vst.msk [vmem:[%s350] sm:$0xff] %vm32, %v348
    %v352 = vsel %vm32, %v348, %v339
    %v353 = vpack.c.bf16 %v352, %v352
    %v354 = vld [vmem:[%s1] sm:$0xff]
    %v355 = vld [vmem:[%s1 + $0x8] sm:$0xff]
    %v356 = vld [vmem:[%s1 + $0x10] sm:$0xff]
    %v357 = vld [vmem:[%s1 + $0x18] sm:$0xff]
    %v358 = vld [vmem:[%s1 + $0x20] sm:$0xff]
    %v359 = vld [vmem:[%s1 + $0x28] sm:$0xff]
    %v360 = vld [vmem:[%s1 + $0x30] sm:$0xff]
    %v361 = vld [vmem:[%s1 + $0x38] sm:$0xff]
    %v370 = vunpack.c.l.b16 %v354
    %v371 = vunpack.c.h.b16 %v354
    %v372 = vunpack.c.l.b16 %v355
    %v373 = vunpack.c.h.b16 %v355
    %v374 = vunpack.c.l.b16 %v356
    %v375 = vunpack.c.h.b16 %v356
    %v376 = vunpack.c.l.b16 %v357
    %v377 = vunpack.c.h.b16 %v357
    %v378 = vunpack.c.l.b16 %v358
    %v379 = vunpack.c.h.b16 %v358
    %v380 = vunpack.c.l.b16 %v359
    %v381 = vunpack.c.h.b16 %v359
    %v382 = vunpack.c.l.b16 %v360
    %v383 = vunpack.c.h.b16 %v360
    %v384 = vunpack.c.l.b16 %v361
    %v385 = vunpack.c.h.b16 %v361
    %v386 = vpack.c.b16 %v372, %v370
    %v387 = vpack.c.b16 %v373, %v371
    %v388 = vpack.c.b16 %v376, %v374
    %v389 = vpack.c.b16 %v377, %v375
    %v390 = vpack.c.b16 %v380, %v378
    %v391 = vpack.c.b16 %v381, %v379
    %v392 = vpack.c.b16 %v384, %v382
    %v393 = vpack.c.b16 %v385, %v383
    %v403 = vsel %vm83, %v353, 0
    %405 = vmatpush.bf16.msra.mxu0 0
    %406 = vmatpush.bf16.msra.mxu0 0
    %407 = vmatpush.bf16.msra.mxu0 0
    %408 = vmatpush.bf16.msra.mxu0 0
    %409 = vmatpush.bf16.msra.mxu0 %v392
    %410 = vmatpush.bf16.msra.mxu0 %v390
    %411 = vmatpush.bf16.msra.mxu0 %v388
    %412 = vmatpush.bf16.msra.mxu0 %v386
    %413 = vmatmul.bf16.gmra.mxu0 %v403
    %v414 = vpop.f32.mrf.mxu0
    %v415 = vadd.f32 0.0, %v414
    %v416 = vpop.f32.mrf.mxu0
    %417 = vdwg.mxu0
    %418 = vmatpush.bf16.msra.mxu0 0
    %419 = vmatpush.bf16.msra.mxu0 0
    %420 = vmatpush.bf16.msra.mxu0 0
    %421 = vmatpush.bf16.msra.mxu0 0
    %422 = vmatpush.bf16.msra.mxu0 %v393
    %423 = vmatpush.bf16.msra.mxu0 %v391
    %424 = vmatpush.bf16.msra.mxu0 %v389
    %425 = vmatpush.bf16.msra.mxu0 %v387
    %426 = vmatmul.bf16.gmra.mxu0 %v403
    %v427 = vpop.f32.mrf.mxu0
    %v428 = vadd.f32 0.0, %v427
    %v429 = vpop.f32.mrf.mxu0
    %430 = vdwg.mxu0
    %s431 = scalar_lea.vmem %s0, 16
    %v432 = vld [vmem:[%s431] sm:$0xff]
    %v433 = vunpack.c.l.bf16 %v432
    %v434 = vunpack.c.h.bf16 %v432
    %v435 = vadd.f32 %v428, %v434
    %v436 = vtanh.pop %v435
    %v437 = vld [vmem:[%s2] sm:$0x1]
    %v439 = vperm.slane %v437, 0
    %v441 = vmul.f32 %v436, %v439
    %v442 = vsel %vm32, %v441, 0.0
    %443 = vadd.xlane.f32.xlu0 %v442
    %v444 = vpop.xlane.xlu0 %443
    %v445 = vrot.slane %v444, 4
    %v446 = vmax.f32 %v444, %v445
    %v447 = vrot.slane %v446, 2
    %v448 = vmax.f32 %v446, %v447
    %v449 = vrot.slane %v448, 1
    %v450 = vmax.f32 %v448, %v449
    %v451 = vsub.f32 %v444, %v450
    %v452 = vmul.f32 %v451, 1.442695
    %v453 = vpow.pop %v452
    %v454 = vrot.slane %v453, 4
    %v455 = vadd.f32 %v453, %v454
    %v456 = vrot.slane %v455, 2
    %v457 = vadd.f32 %v455, %v456
    %v458 = vrot.slane %v457, 1
    %v459 = vadd.f32 %v457, %v458
    %v460 = vrcp.pop %v459
    %v461 = vmul.f32 %v453, %v460
    %v462 = vmul.f32 %v461, %v433
    %v463 = vadd.f32 %v462, %v415
    %v464 = vld [vmem:[%s3] sm:$0x1]
    %v466 = vperm.slane %v464, 0
    %v468 = vadd.f32 %v463, %v466
    %v469 = vxor.u32 %v468, 2147483648
    %v470 = vmul.f32 %v469, 1.442695
    %v471 = vpow.pop %v470
    %v472 = vadd.f32 %v471, 1.0
    %v473 = vrcp.pop %v472
    %v474 = vmul.f32 %v472, %v473
    %v475 = vsub.f32 1.0, %v474
    %v476 = vmul.f32 %v473, %v475
    %v477 = vadd.f32 %v473, %v476
    %vm478 = vweird.f32 %v472
    %vm479 = vweird.f32 %v473
    %vm480 = vmor %vm478, %vm479
    %v481 = vsel %vm480, %v473, %v477
    %v482 = vand.u32 2147483647, %v472
    %vm483 = vcmp.eq.f32.partialorder %v482, 8.507059e+37
    %v484 = vand.u32 %v472, 2147483648
    %v485 = vor.u32 1.1754944e-38, %v484
    %v486 = vsel %vm483, %v485, %v481
    %v487 = vmul.f32 1.0, %v486
    %v488 = vtanh.pop %v468
    %v489 = vmul.f32 %v487, %v339
    %491 = vrot.lane.b32.xlu0 %v488, 64
    %v492 = vpop.permute.xlu0 %491
    %v494 = vmul.f32 %v487, %v492
    %496 = vrot.lane.b32.xlu0 %v494, 32
    %v497 = vpop.permute.xlu0 %496
    %v499 = vadd.f32 %v489, %v497
    %v500 = vtanh.pop %v499
    %502 = vrot.lane.b32.xlu0 %v500, 64
    %v503 = vpop.permute.xlu0 %502
    %v505 = vmul.f32 %v487, %v503
    %507 = vrot.lane.b32.xlu0 %v505, 32
    %v508 = vpop.permute.xlu0 %507
    %s510 = scalar_lea.vmem [#allocation4], 16
    %511 = vst.msk [vmem:[%s510] sm:$0xff] %vm32, %v508
    %v512 = vsel %vm32, %v508, %v499
    %v513 = vpack.c.bf16 %v512, %v512
    %v514 = vld [vmem:[%s1] sm:$0xff]
    %v515 = vld [vmem:[%s1 + $0x8] sm:$0xff]
    %v516 = vld [vmem:[%s1 + $0x10] sm:$0xff]
    %v517 = vld [vmem:[%s1 + $0x18] sm:$0xff]
    %v518 = vld [vmem:[%s1 + $0x20] sm:$0xff]
    %v519 = vld [vmem:[%s1 + $0x28] sm:$0xff]
    %v520 = vld [vmem:[%s1 + $0x30] sm:$0xff]
    %v521 = vld [vmem:[%s1 + $0x38] sm:$0xff]
    %v530 = vunpack.c.l.b16 %v514
    %v531 = vunpack.c.h.b16 %v514
    %v532 = vunpack.c.l.b16 %v515
    %v533 = vunpack.c.h.b16 %v515
    %v534 = vunpack.c.l.b16 %v516
    %v535 = vunpack.c.h.b16 %v516
    %v536 = vunpack.c.l.b16 %v517
    %v537 = vunpack.c.h.b16 %v517
    %v538 = vunpack.c.l.b16 %v518
    %v539 = vunpack.c.h.b16 %v518
    %v540 = vunpack.c.l.b16 %v519
    %v541 = vunpack.c.h.b16 %v519
    %v542 = vunpack.c.l.b16 %v520
    %v543 = vunpack.c.h.b16 %v520
    %v544 = vunpack.c.l.b16 %v521
    %v545 = vunpack.c.h.b16 %v521
    %v546 = vpack.c.b16 %v532, %v530
    %v547 = vpack.c.b16 %v533, %v531
    %v548 = vpack.c.b16 %v536, %v534
    %v549 = vpack.c.b16 %v537, %v535
    %v550 = vpack.c.b16 %v540, %v538
    %v551 = vpack.c.b16 %v541, %v539
    %v552 = vpack.c.b16 %v544, %v542
    %v553 = vpack.c.b16 %v545, %v543
    %v563 = vsel %vm83, %v513, 0
    %565 = vmatpush.bf16.msra.mxu0 0
    %566 = vmatpush.bf16.msra.mxu0 0
    %567 = vmatpush.bf16.msra.mxu0 0
    %568 = vmatpush.bf16.msra.mxu0 0
    %569 = vmatpush.bf16.msra.mxu0 %v552
    %570 = vmatpush.bf16.msra.mxu0 %v550
    %571 = vmatpush.bf16.msra.mxu0 %v548
    %572 = vmatpush.bf16.msra.mxu0 %v546
    %573 = vmatmul.bf16.gmra.mxu0 %v563
    %v574 = vpop.f32.mrf.mxu0
    %v575 = vadd.f32 0.0, %v574
    %v576 = vpop.f32.mrf.mxu0
    %577 = vdwg.mxu0
    %578 = vmatpush.bf16.msra.mxu0 0
    %579 = vmatpush.bf16.msra.mxu0 0
    %580 = vmatpush.bf16.msra.mxu0 0
    %581 = vmatpush.bf16.msra.mxu0 0
    %582 = vmatpush.bf16.msra.mxu0 %v553
    %583 = vmatpush.bf16.msra.mxu0 %v551
    %584 = vmatpush.bf16.msra.mxu0 %v549
    %585 = vmatpush.bf16.msra.mxu0 %v547
    %586 = vmatmul.bf16.gmra.mxu0 %v563
    %v587 = vpop.f32.mrf.mxu0
    %v588 = vadd.f32 0.0, %v587
    %v589 = vpop.f32.mrf.mxu0
    %590 = vdwg.mxu0
    %s591 = scalar_lea.vmem %s0, 24
    %v592 = vld [vmem:[%s591] sm:$0xff]
    %v593 = vunpack.c.l.bf16 %v592
    %v594 = vunpack.c.h.bf16 %v592
    %v595 = vadd.f32 %v588, %v594
    %v596 = vtanh.pop %v595
    %v597 = vld [vmem:[%s2] sm:$0x1]
    %v599 = vperm.slane %v597, 0
    %v601 = vmul.f32 %v596, %v599
    %v602 = vsel %vm32, %v601, 0.0
    %603 = vadd.xlane.f32.xlu0 %v602
    %v604 = vpop.xlane.xlu0 %603
    %v605 = vrot.slane %v604, 4
    %v606 = vmax.f32 %v604, %v605
    %v607 = vrot.slane %v606, 2
    %v608 = vmax.f32 %v606, %v607
    %v609 = vrot.slane %v608, 1
    %v610 = vmax.f32 %v608, %v609
    %v611 = vsub.f32 %v604, %v610
    %v612 = vmul.f32 %v611, 1.442695
    %v613 = vpow.pop %v612
    %v614 = vrot.slane %v613, 4
    %v615 = vadd.f32 %v613, %v614
    %v616 = vrot.slane %v615, 2
    %v617 = vadd.f32 %v615, %v616
    %v618 = vrot.slane %v617, 1
    %v619 = vadd.f32 %v617, %v618
    %v620 = vrcp.pop %v619
    %v621 = vmul.f32 %v613, %v620
    %v622 = vmul.f32 %v621, %v593
    %v623 = vadd.f32 %v622, %v575
    %v624 = vld [vmem:[%s3] sm:$0x1]
    %v626 = vperm.slane %v624, 0
    %v628 = vadd.f32 %v623, %v626
    %v629 = vxor.u32 %v628, 2147483648
    %v630 = vmul.f32 %v629, 1.442695
    %v631 = vpow.pop %v630
    %v632 = vadd.f32 %v631, 1.0
    %v633 = vrcp.pop %v632
    %v634 = vmul.f32 %v632, %v633
    %v635 = vsub.f32 1.0, %v634
    %v636 = vmul.f32 %v633, %v635
    %v637 = vadd.f32 %v633, %v636
    %vm638 = vweird.f32 %v632
    %vm639 = vweird.f32 %v633
    %vm640 = vmor %vm638, %vm639
    %v641 = vsel %vm640, %v633, %v637
    %v642 = vand.u32 2147483647, %v632
    %vm643 = vcmp.eq.f32.partialorder %v642, 8.507059e+37
    %v644 = vand.u32 %v632, 2147483648
    %v645 = vor.u32 1.1754944e-38, %v644
    %v646 = vsel %vm643, %v645, %v641
    %v647 = vmul.f32 1.0, %v646
    %v648 = vtanh.pop %v628
    %v649 = vmul.f32 %v647, %v499
    %651 = vrot.lane.b32.xlu0 %v648, 64
    %v652 = vpop.permute.xlu0 %651
    %v654 = vmul.f32 %v647, %v652
    %656 = vrot.lane.b32.xlu0 %v654, 32
    %v657 = vpop.permute.xlu0 %656
    %v659 = vadd.f32 %v649, %v657
    %v660 = vtanh.pop %v659
    %662 = vrot.lane.b32.xlu0 %v660, 64
    %v663 = vpop.permute.xlu0 %662
    %v665 = vmul.f32 %v647, %v663
    %667 = vrot.lane.b32.xlu0 %v665, 32
    %v668 = vpop.permute.xlu0 %667
    %s670 = scalar_lea.vmem [#allocation4], 24
    %671 = vst.msk [vmem:[%s670] sm:$0xff] %vm32, %v668
    %v672 = vsel %vm32, %v668, %v659
    %v673 = vpack.c.bf16 %v672, %v672
    %v674 = vld [vmem:[%s1] sm:$0xff]
    %v675 = vld [vmem:[%s1 + $0x8] sm:$0xff]
    %v676 = vld [vmem:[%s1 + $0x10] sm:$0xff]
    %v677 = vld [vmem:[%s1 + $0x18] sm:$0xff]
    %v678 = vld [vmem:[%s1 + $0x20] sm:$0xff]
    %v679 = vld [vmem:[%s1 + $0x28] sm:$0xff]
    %v680 = vld [vmem:[%s1 + $0x30] sm:$0xff]
    %v681 = vld [vmem:[%s1 + $0x38] sm:$0xff]
    %v690 = vunpack.c.l.b16 %v674
    %v691 = vunpack.c.h.b16 %v674
    %v692 = vunpack.c.l.b16 %v675
    %v693 = vunpack.c.h.b16 %v675
    %v694 = vunpack.c.l.b16 %v676
    %v695 = vunpack.c.h.b16 %v676
    %v696 = vunpack.c.l.b16 %v677
    %v697 = vunpack.c.h.b16 %v677
    %v698 = vunpack.c.l.b16 %v678
    %v699 = vunpack.c.h.b16 %v678
    %v700 = vunpack.c.l.b16 %v679
    %v701 = vunpack.c.h.b16 %v679
    %v702 = vunpack.c.l.b16 %v680
    %v703 = vunpack.c.h.b16 %v680
    %v704 = vunpack.c.l.b16 %v681
    %v705 = vunpack.c.h.b16 %v681
    %v706 = vpack.c.b16 %v692, %v690
    %v707 = vpack.c.b16 %v693, %v691
    %v708 = vpack.c.b16 %v696, %v694
    %v709 = vpack.c.b16 %v697, %v695
    %v710 = vpack.c.b16 %v700, %v698
    %v711 = vpack.c.b16 %v701, %v699
    %v712 = vpack.c.b16 %v704, %v702
    %v713 = vpack.c.b16 %v705, %v703
    %v723 = vsel %vm83, %v673, 0
    %725 = vmatpush.bf16.msra.mxu0 0
    %726 = vmatpush.bf16.msra.mxu0 0
    %727 = vmatpush.bf16.msra.mxu0 0
    %728 = vmatpush.bf16.msra.mxu0 0
    %729 = vmatpush.bf16.msra.mxu0 %v712
    %730 = vmatpush.bf16.msra.mxu0 %v710
    %731 = vmatpush.bf16.msra.mxu0 %v708
    %732 = vmatpush.bf16.msra.mxu0 %v706
    %733 = vmatmul.bf16.gmra.mxu0 %v723
    %v734 = vpop.f32.mrf.mxu0
    %v735 = vadd.f32 0.0, %v734
    %v736 = vpop.f32.mrf.mxu0
    %737 = vdwg.mxu0
    %738 = vmatpush.bf16.msra.mxu0 0
    %739 = vmatpush.bf16.msra.mxu0 0
    %740 = vmatpush.bf16.msra.mxu0 0
    %741 = vmatpush.bf16.msra.mxu0 0
    %742 = vmatpush.bf16.msra.mxu0 %v713
    %743 = vmatpush.bf16.msra.mxu0 %v711
    %744 = vmatpush.bf16.msra.mxu0 %v709
    %745 = vmatpush.bf16.msra.mxu0 %v707
    %746 = vmatmul.bf16.gmra.mxu0 %v723
    %v747 = vpop.f32.mrf.mxu0
    %v748 = vadd.f32 0.0, %v747
    %v749 = vpop.f32.mrf.mxu0
    %750 = vdwg.mxu0
    %s751 = scalar_lea.vmem %s0, 32
    %v752 = vld [vmem:[%s751] sm:$0xff]
    %v753 = vunpack.c.l.bf16 %v752
    %v754 = vunpack.c.h.bf16 %v752
    %v755 = vadd.f32 %v748, %v754
    %v756 = vtanh.pop %v755
    %v757 = vld [vmem:[%s2] sm:$0x1]
    %v759 = vperm.slane %v757, 0
    %v761 = vmul.f32 %v756, %v759
    %v762 = vsel %vm32, %v761, 0.0
    %763 = vadd.xlane.f32.xlu0 %v762
    %v764 = vpop.xlane.xlu0 %763
    %v765 = vrot.slane %v764, 4
    %v766 = vmax.f32 %v764, %v765
    %v767 = vrot.slane %v766, 2
    %v768 = vmax.f32 %v766, %v767
    %v769 = vrot.slane %v768, 1
    %v770 = vmax.f32 %v768, %v769
    %v771 = vsub.f32 %v764, %v770
    %v772 = vmul.f32 %v771, 1.442695
    %v773 = vpow.pop %v772
    %v774 = vrot.slane %v773, 4
    %v775 = vadd.f32 %v773, %v774
    %v776 = vrot.slane %v775, 2
    %v777 = vadd.f32 %v775, %v776
    %v778 = vrot.slane %v777, 1
    %v779 = vadd.f32 %v777, %v778
    %v780 = vrcp.pop %v779
    %v781 = vmul.f32 %v773, %v780
    %v782 = vmul.f32 %v781, %v753
    %v783 = vadd.f32 %v782, %v735
    %v784 = vld [vmem:[%s3] sm:$0x1]
    %v786 = vperm.slane %v784, 0
    %v788 = vadd.f32 %v783, %v786
    %v789 = vxor.u32 %v788, 2147483648
    %v790 = vmul.f32 %v789, 1.442695
    %v791 = vpow.pop %v790
    %v792 = vadd.f32 %v791, 1.0
    %v793 = vrcp.pop %v792
    %v794 = vmul.f32 %v792, %v793
    %v795 = vsub.f32 1.0, %v794
    %v796 = vmul.f32 %v793, %v795
    %v797 = vadd.f32 %v793, %v796
    %vm798 = vweird.f32 %v792
    %vm799 = vweird.f32 %v793
    %vm800 = vmor %vm798, %vm799
    %v801 = vsel %vm800, %v793, %v797
    %v802 = vand.u32 2147483647, %v792
    %vm803 = vcmp.eq.f32.partialorder %v802, 8.507059e+37
    %v804 = vand.u32 %v792, 2147483648
    %v805 = vor.u32 1.1754944e-38, %v804
    %v806 = vsel %vm803, %v805, %v801
    %v807 = vmul.f32 1.0, %v806
    %v808 = vtanh.pop %v788
    %v809 = vmul.f32 %v807, %v659
    %811 = vrot.lane.b32.xlu0 %v808, 64
    %v812 = vpop.permute.xlu0 %811
    %v814 = vmul.f32 %v807, %v812
    %816 = vrot.lane.b32.xlu0 %v814, 32
    %v817 = vpop.permute.xlu0 %816
    %v819 = vadd.f32 %v809, %v817
    %v820 = vtanh.pop %v819
    %822 = vrot.lane.b32.xlu0 %v820, 64
    %v823 = vpop.permute.xlu0 %822
    %v825 = vmul.f32 %v807, %v823
    %827 = vrot.lane.b32.xlu0 %v825, 32
    %v828 = vpop.permute.xlu0 %827
    %s830 = scalar_lea.vmem [#allocation4], 32
    %831 = vst.msk [vmem:[%s830] sm:$0xff] %vm32, %v828
    %v832 = vsel %vm32, %v828, %v819
    %v833 = vpack.c.bf16 %v832, %v832
    %v834 = vld [vmem:[%s1] sm:$0xff]
    %v835 = vld [vmem:[%s1 + $0x8] sm:$0xff]
    %v836 = vld [vmem:[%s1 + $0x10] sm:$0xff]
    %v837 = vld [vmem:[%s1 + $0x18] sm:$0xff]
    %v838 = vld [vmem:[%s1 + $0x20] sm:$0xff]
    %v839 = vld [vmem:[%s1 + $0x28] sm:$0xff]
    %v840 = vld [vmem:[%s1 + $0x30] sm:$0xff]
    %v841 = vld [vmem:[%s1 + $0x38] sm:$0xff]
    %v850 = vunpack.c.l.b16 %v834
    %v851 = vunpack.c.h.b16 %v834
    %v852 = vunpack.c.l.b16 %v835
    %v853 = vunpack.c.h.b16 %v835
    %v854 = vunpack.c.l.b16 %v836
    %v855 = vunpack.c.h.b16 %v836
    %v856 = vunpack.c.l.b16 %v837
    %v857 = vunpack.c.h.b16 %v837
    %v858 = vunpack.c.l.b16 %v838
    %v859 = vunpack.c.h.b16 %v838
    %v860 = vunpack.c.l.b16 %v839
    %v861 = vunpack.c.h.b16 %v839
    %v862 = vunpack.c.l.b16 %v840
    %v863 = vunpack.c.h.b16 %v840
    %v864 = vunpack.c.l.b16 %v841
    %v865 = vunpack.c.h.b16 %v841
    %v866 = vpack.c.b16 %v852, %v850
    %v867 = vpack.c.b16 %v853, %v851
    %v868 = vpack.c.b16 %v856, %v854
    %v869 = vpack.c.b16 %v857, %v855
    %v870 = vpack.c.b16 %v860, %v858
    %v871 = vpack.c.b16 %v861, %v859
    %v872 = vpack.c.b16 %v864, %v862
    %v873 = vpack.c.b16 %v865, %v863
    %v883 = vsel %vm83, %v833, 0
    %885 = vmatpush.bf16.msra.mxu0 0
    %886 = vmatpush.bf16.msra.mxu0 0
    %887 = vmatpush.bf16.msra.mxu0 0
    %888 = vmatpush.bf16.msra.mxu0 0
    %889 = vmatpush.bf16.msra.mxu0 %v872
    %890 = vmatpush.bf16.msra.mxu0 %v870
    %891 = vmatpush.bf16.msra.mxu0 %v868
    %892 = vmatpush.bf16.msra.mxu0 %v866
    %893 = vmatmul.bf16.gmra.mxu0 %v883
    %v894 = vpop.f32.mrf.mxu0
    %v895 = vadd.f32 0.0, %v894
    %v896 = vpop.f32.mrf.mxu0
    %897 = vdwg.mxu0
    %898 = vmatpush.bf16.msra.mxu0 0
    %899 = vmatpush.bf16.msra.mxu0 0
    %900 = vmatpush.bf16.msra.mxu0 0
    %901 = vmatpush.bf16.msra.mxu0 0
    %902 = vmatpush.bf16.msra.mxu0 %v873
    %903 = vmatpush.bf16.msra.mxu0 %v871
    %904 = vmatpush.bf16.msra.mxu0 %v869
    %905 = vmatpush.bf16.msra.mxu0 %v867
    %906 = vmatmul.bf16.gmra.mxu0 %v883
    %v907 = vpop.f32.mrf.mxu0
    %v908 = vadd.f32 0.0, %v907
    %v909 = vpop.f32.mrf.mxu0
    %910 = vdwg.mxu0
    %s911 = scalar_lea.vmem %s0, 40
    %v912 = vld [vmem:[%s911] sm:$0xff]
    %v913 = vunpack.c.l.bf16 %v912
    %v914 = vunpack.c.h.bf16 %v912
    %v915 = vadd.f32 %v908, %v914
    %v916 = vtanh.pop %v915
    %v917 = vld [vmem:[%s2] sm:$0x1]
    %v919 = vperm.slane %v917, 0
    %v921 = vmul.f32 %v916, %v919
    %v922 = vsel %vm32, %v921, 0.0
    %923 = vadd.xlane.f32.xlu0 %v922
    %v924 = vpop.xlane.xlu0 %923
    %v925 = vrot.slane %v924, 4
    %v926 = vmax.f32 %v924, %v925
    %v927 = vrot.slane %v926, 2
    %v928 = vmax.f32 %v926, %v927
    %v929 = vrot.slane %v928, 1
    %v930 = vmax.f32 %v928, %v929
    %v931 = vsub.f32 %v924, %v930
    %v932 = vmul.f32 %v931, 1.442695
    %v933 = vpow.pop %v932
    %v934 = vrot.slane %v933, 4
    %v935 = vadd.f32 %v933, %v934
    %v936 = vrot.slane %v935, 2
    %v937 = vadd.f32 %v935, %v936
    %v938 = vrot.slane %v937, 1
    %v939 = vadd.f32 %v937, %v938
    %v940 = vrcp.pop %v939
    %v941 = vmul.f32 %v933, %v940
    %v942 = vmul.f32 %v941, %v913
    %v943 = vadd.f32 %v942, %v895
    %v944 = vld [vmem:[%s3] sm:$0x1]
    %v946 = vperm.slane %v944, 0
    %v948 = vadd.f32 %v943, %v946
    %v949 = vxor.u32 %v948, 2147483648
    %v950 = vmul.f32 %v949, 1.442695
    %v951 = vpow.pop %v950
    %v952 = vadd.f32 %v951, 1.0
    %v953 = vrcp.pop %v952
    %v954 = vmul.f32 %v952, %v953
    %v955 = vsub.f32 1.0, %v954
    %v956 = vmul.f32 %v953, %v955
    %v957 = vadd.f32 %v953, %v956
    %vm958 = vweird.f32 %v952
    %vm959 = vweird.f32 %v953
    %vm960 = vmor %vm958, %vm959
    %v961 = vsel %vm960, %v953, %v957
    %v962 = vand.u32 2147483647, %v952
    %vm963 = vcmp.eq.f32.partialorder %v962, 8.507059e+37
    %v964 = vand.u32 %v952, 2147483648
    %v965 = vor.u32 1.1754944e-38, %v964
    %v966 = vsel %vm963, %v965, %v961
    %v967 = vmul.f32 1.0, %v966
    %v968 = vtanh.pop %v948
    %v969 = vmul.f32 %v967, %v819
    %971 = vrot.lane.b32.xlu0 %v968, 64
    %v972 = vpop.permute.xlu0 %971
    %v974 = vmul.f32 %v967, %v972
    %976 = vrot.lane.b32.xlu0 %v974, 32
    %v977 = vpop.permute.xlu0 %976
    %v979 = vadd.f32 %v969, %v977
    %v980 = vtanh.pop %v979
    %982 = vrot.lane.b32.xlu0 %v980, 64
    %v983 = vpop.permute.xlu0 %982
    %v985 = vmul.f32 %v967, %v983
    %987 = vrot.lane.b32.xlu0 %v985, 32
    %v988 = vpop.permute.xlu0 %987
    %s990 = scalar_lea.vmem [#allocation4], 40
    %991 = vst.msk [vmem:[%s990] sm:$0xff] %vm32, %v988
    %v992 = vsel %vm32, %v988, %v979
    %v993 = vpack.c.bf16 %v992, %v992
    %v994 = vld [vmem:[%s1] sm:$0xff]
    %v995 = vld [vmem:[%s1 + $0x8] sm:$0xff]
    %v996 = vld [vmem:[%s1 + $0x10] sm:$0xff]
    %v997 = vld [vmem:[%s1 + $0x18] sm:$0xff]
    %v998 = vld [vmem:[%s1 + $0x20] sm:$0xff]
    %v999 = vld [vmem:[%s1 + $0x28] sm:$0xff]
    %v1000 = vld [vmem:[%s1 + $0x30] sm:$0xff]
    %v1001 = vld [vmem:[%s1 + $0x38] sm:$0xff]
    %v1010 = vunpack.c.l.b16 %v994
    %v1011 = vunpack.c.h.b16 %v994
    %v1012 = vunpack.c.l.b16 %v995
    %v1013 = vunpack.c.h.b16 %v995
    %v1014 = vunpack.c.l.b16 %v996
    %v1015 = vunpack.c.h.b16 %v996
    %v1016 = vunpack.c.l.b16 %v997
    %v1017 = vunpack.c.h.b16 %v997
    %v1018 = vunpack.c.l.b16 %v998
    %v1019 = vunpack.c.h.b16 %v998
    %v1020 = vunpack.c.l.b16 %v999
    %v1021 = vunpack.c.h.b16 %v999
    %v1022 = vunpack.c.l.b16 %v1000
    %v1023 = vunpack.c.h.b16 %v1000
    %v1024 = vunpack.c.l.b16 %v1001
    %v1025 = vunpack.c.h.b16 %v1001
    %v1026 = vpack.c.b16 %v1012, %v1010
    %v1027 = vpack.c.b16 %v1013, %v1011
    %v1028 = vpack.c.b16 %v1016, %v1014
    %v1029 = vpack.c.b16 %v1017, %v1015
    %v1030 = vpack.c.b16 %v1020, %v1018
    %v1031 = vpack.c.b16 %v1021, %v1019
    %v1032 = vpack.c.b16 %v1024, %v1022
    %v1033 = vpack.c.b16 %v1025, %v1023
    %v1043 = vsel %vm83, %v993, 0
    %1045 = vmatpush.bf16.msra.mxu0 0
    %1046 = vmatpush.bf16.msra.mxu0 0
    %1047 = vmatpush.bf16.msra.mxu0 0
    %1048 = vmatpush.bf16.msra.mxu0 0
    %1049 = vmatpush.bf16.msra.mxu0 %v1032
    %1050 = vmatpush.bf16.msra.mxu0 %v1030
    %1051 = vmatpush.bf16.msra.mxu0 %v1028
    %1052 = vmatpush.bf16.msra.mxu0 %v1026
    %1053 = vmatmul.bf16.gmra.mxu0 %v1043
    %v1054 = vpop.f32.mrf.mxu0
    %v1055 = vadd.f32 0.0, %v1054
    %v1056 = vpop.f32.mrf.mxu0
    %1057 = vdwg.mxu0
    %1058 = vmatpush.bf16.msra.mxu0 0
    %1059 = vmatpush.bf16.msra.mxu0 0
    %1060 = vmatpush.bf16.msra.mxu0 0
    %1061 = vmatpush.bf16.msra.mxu0 0
    %1062 = vmatpush.bf16.msra.mxu0 %v1033
    %1063 = vmatpush.bf16.msra.mxu0 %v1031
    %1064 = vmatpush.bf16.msra.mxu0 %v1029
    %1065 = vmatpush.bf16.msra.mxu0 %v1027
    %1066 = vmatmul.bf16.gmra.mxu0 %v1043
    %v1067 = vpop.f32.mrf.mxu0
    %v1068 = vadd.f32 0.0, %v1067
    %v1069 = vpop.f32.mrf.mxu0
    %1070 = vdwg.mxu0
    %s1071 = scalar_lea.vmem %s0, 48
    %v1072 = vld [vmem:[%s1071] sm:$0xff]
    %v1073 = vunpack.c.l.bf16 %v1072
    %v1074 = vunpack.c.h.bf16 %v1072
    %v1075 = vadd.f32 %v1068, %v1074
    %v1076 = vtanh.pop %v1075
    %v1077 = vld [vmem:[%s2] sm:$0x1]
    %v1079 = vperm.slane %v1077, 0
    %v1081 = vmul.f32 %v1076, %v1079
    %v1082 = vsel %vm32, %v1081, 0.0
    %1083 = vadd.xlane.f32.xlu0 %v1082
    %v1084 = vpop.xlane.xlu0 %1083
    %v1085 = vrot.slane %v1084, 4
    %v1086 = vmax.f32 %v1084, %v1085
    %v1087 = vrot.slane %v1086, 2
    %v1088 = vmax.f32 %v1086, %v1087
    %v1089 = vrot.slane %v1088, 1
    %v1090 = vmax.f32 %v1088, %v1089
    %v1091 = vsub.f32 %v1084, %v1090
    %v1092 = vmul.f32 %v1091, 1.442695
    %v1093 = vpow.pop %v1092
    %v1094 = vrot.slane %v1093, 4
    %v1095 = vadd.f32 %v1093, %v1094
    %v1096 = vrot.slane %v1095, 2
    %v1097 = vadd.f32 %v1095, %v1096
    %v1098 = vrot.slane %v1097, 1
    %v1099 = vadd.f32 %v1097, %v1098
    %v1100 = vrcp.pop %v1099
    %v1101 = vmul.f32 %v1093, %v1100
    %v1102 = vmul.f32 %v1101, %v1073
    %v1103 = vadd.f32 %v1102, %v1055
    %v1104 = vld [vmem:[%s3] sm:$0x1]
    %v1106 = vperm.slane %v1104, 0
    %v1108 = vadd.f32 %v1103, %v1106
    %v1109 = vxor.u32 %v1108, 2147483648
    %v1110 = vmul.f32 %v1109, 1.442695
    %v1111 = vpow.pop %v1110
    %v1112 = vadd.f32 %v1111, 1.0
    %v1113 = vrcp.pop %v1112
    %v1114 = vmul.f32 %v1112, %v1113
    %v1115 = vsub.f32 1.0, %v1114
    %v1116 = vmul.f32 %v1113, %v1115
    %v1117 = vadd.f32 %v1113, %v1116
    %vm1118 = vweird.f32 %v1112
    %vm1119 = vweird.f32 %v1113
    %vm1120 = vmor %vm1118, %vm1119
    %v1121 = vsel %vm1120, %v1113, %v1117
    %v1122 = vand.u32 2147483647, %v1112
    %vm1123 = vcmp.eq.f32.partialorder %v1122, 8.507059e+37
    %v1124 = vand.u32 %v1112, 2147483648
    %v1125 = vor.u32 1.1754944e-38, %v1124
    %v1126 = vsel %vm1123, %v1125, %v1121
    %v1127 = vmul.f32 1.0, %v1126
    %v1128 = vtanh.pop %v1108
    %v1129 = vmul.f32 %v1127, %v979
    %1131 = vrot.lane.b32.xlu0 %v1128, 64
    %v1132 = vpop.permute.xlu0 %1131
    %v1134 = vmul.f32 %v1127, %v1132
    %1136 = vrot.lane.b32.xlu0 %v1134, 32
    %v1137 = vpop.permute.xlu0 %1136
    %v1139 = vadd.f32 %v1129, %v1137
    %v1140 = vtanh.pop %v1139
    %1142 = vrot.lane.b32.xlu0 %v1140, 64
    %v1143 = vpop.permute.xlu0 %1142
    %v1145 = vmul.f32 %v1127, %v1143
    %1147 = vrot.lane.b32.xlu0 %v1145, 32
    %v1148 = vpop.permute.xlu0 %1147
    %s1150 = scalar_lea.vmem [#allocation4], 48
    %1151 = vst.msk [vmem:[%s1150] sm:$0xff] %vm32, %v1148
    %v1152 = vsel %vm32, %v1148, %v1139
    %v1153 = vpack.c.bf16 %v1152, %v1152
    %v1154 = vld [vmem:[%s1] sm:$0xff]
    %v1155 = vld [vmem:[%s1 + $0x8] sm:$0xff]
    %v1156 = vld [vmem:[%s1 + $0x10] sm:$0xff]
    %v1157 = vld [vmem:[%s1 + $0x18] sm:$0xff]
    %v1158 = vld [vmem:[%s1 + $0x20] sm:$0xff]
    %v1159 = vld [vmem:[%s1 + $0x28] sm:$0xff]
    %v1160 = vld [vmem:[%s1 + $0x30] sm:$0xff]
    %v1161 = vld [vmem:[%s1 + $0x38] sm:$0xff]
    %v1170 = vunpack.c.l.b16 %v1154
    %v1171 = vunpack.c.h.b16 %v1154
    %v1172 = vunpack.c.l.b16 %v1155
    %v1173 = vunpack.c.h.b16 %v1155
    %v1174 = vunpack.c.l.b16 %v1156
    %v1175 = vunpack.c.h.b16 %v1156
    %v1176 = vunpack.c.l.b16 %v1157
    %v1177 = vunpack.c.h.b16 %v1157
    %v1178 = vunpack.c.l.b16 %v1158
    %v1179 = vunpack.c.h.b16 %v1158
    %v1180 = vunpack.c.l.b16 %v1159
    %v1181 = vunpack.c.h.b16 %v1159
    %v1182 = vunpack.c.l.b16 %v1160
    %v1183 = vunpack.c.h.b16 %v1160
    %v1184 = vunpack.c.l.b16 %v1161
    %v1185 = vunpack.c.h.b16 %v1161
    %v1186 = vpack.c.b16 %v1172, %v1170
    %v1187 = vpack.c.b16 %v1173, %v1171
    %v1188 = vpack.c.b16 %v1176, %v1174
    %v1189 = vpack.c.b16 %v1177, %v1175
    %v1190 = vpack.c.b16 %v1180, %v1178
    %v1191 = vpack.c.b16 %v1181, %v1179
    %v1192 = vpack.c.b16 %v1184, %v1182
    %v1193 = vpack.c.b16 %v1185, %v1183
    %v1203 = vsel %vm83, %v1153, 0
    %1205 = vmatpush.bf16.msra.mxu0 0
    %1206 = vmatpush.bf16.msra.mxu0 0
    %1207 = vmatpush.bf16.msra.mxu0 0
    %1208 = vmatpush.bf16.msra.mxu0 0
    %1209 = vmatpush.bf16.msra.mxu0 %v1192
    %1210 = vmatpush.bf16.msra.mxu0 %v1190
    %1211 = vmatpush.bf16.msra.mxu0 %v1188
    %1212 = vmatpush.bf16.msra.mxu0 %v1186
    %1213 = vmatmul.bf16.gmra.mxu0 %v1203
    %v1214 = vpop.f32.mrf.mxu0
    %v1215 = vadd.f32 0.0, %v1214
    %v1216 = vpop.f32.mrf.mxu0
    %1217 = vdwg.mxu0
    %1218 = vmatpush.bf16.msra.mxu0 0
    %1219 = vmatpush.bf16.msra.mxu0 0
    %1220 = vmatpush.bf16.msra.mxu0 0
    %1221 = vmatpush.bf16.msra.mxu0 0
    %1222 = vmatpush.bf16.msra.mxu0 %v1193
    %1223 = vmatpush.bf16.msra.mxu0 %v1191
    %1224 = vmatpush.bf16.msra.mxu0 %v1189
    %1225 = vmatpush.bf16.msra.mxu0 %v1187
    %1226 = vmatmul.bf16.gmra.mxu0 %v1203
    %v1227 = vpop.f32.mrf.mxu0
    %v1228 = vadd.f32 0.0, %v1227
    %v1229 = vpop.f32.mrf.mxu0
    %1230 = vdwg.mxu0
    %s1231 = scalar_lea.vmem %s0, 56
    %v1232 = vld [vmem:[%s1231] sm:$0xff]
    %v1233 = vunpack.c.l.bf16 %v1232
    %v1234 = vunpack.c.h.bf16 %v1232
    %v1235 = vadd.f32 %v1228, %v1234
    %v1236 = vtanh.pop %v1235
    %v1237 = vld [vmem:[%s2] sm:$0x1]
    %v1239 = vperm.slane %v1237, 0
    %v1241 = vmul.f32 %v1236, %v1239
    %v1242 = vsel %vm32, %v1241, 0.0
    %1243 = vadd.xlane.f32.xlu0 %v1242
    %v1244 = vpop.xlane.xlu0 %1243
    %v1245 = vrot.slane %v1244, 4
    %v1246 = vmax.f32 %v1244, %v1245
    %v1247 = vrot.slane %v1246, 2
    %v1248 = vmax.f32 %v1246, %v1247
    %v1249 = vrot.slane %v1248, 1
    %v1250 = vmax.f32 %v1248, %v1249
    %v1251 = vsub.f32 %v1244, %v1250
    %v1252 = vmul.f32 %v1251, 1.442695
    %v1253 = vpow.pop %v1252
    %v1254 = vrot.slane %v1253, 4
    %v1255 = vadd.f32 %v1253, %v1254
    %v1256 = vrot.slane %v1255, 2
    %v1257 = vadd.f32 %v1255, %v1256
    %v1258 = vrot.slane %v1257, 1
    %v1259 = vadd.f32 %v1257, %v1258
    %v1260 = vrcp.pop %v1259
    %v1261 = vmul.f32 %v1253, %v1260
    %v1262 = vmul.f32 %v1261, %v1233
    %v1263 = vadd.f32 %v1262, %v1215
    %v1264 = vld [vmem:[%s3] sm:$0x1]
    %v1266 = vperm.slane %v1264, 0
    %v1268 = vadd.f32 %v1263, %v1266
    %v1269 = vxor.u32 %v1268, 2147483648
    %v1270 = vmul.f32 %v1269, 1.442695
    %v1271 = vpow.pop %v1270
    %v1272 = vadd.f32 %v1271, 1.0
    %v1273 = vrcp.pop %v1272
    %v1274 = vmul.f32 %v1272, %v1273
    %v1275 = vsub.f32 1.0, %v1274
    %v1276 = vmul.f32 %v1273, %v1275
    %v1277 = vadd.f32 %v1273, %v1276
    %vm1278 = vweird.f32 %v1272
    %vm1279 = vweird.f32 %v1273
    %vm1280 = vmor %vm1278, %vm1279
    %v1281 = vsel %vm1280, %v1273, %v1277
    %v1282 = vand.u32 2147483647, %v1272
    %vm1283 = vcmp.eq.f32.partialorder %v1282, 8.507059e+37
    %v1284 = vand.u32 %v1272, 2147483648
    %v1285 = vor.u32 1.1754944e-38, %v1284
    %v1286 = vsel %vm1283, %v1285, %v1281
    %v1287 = vmul.f32 1.0, %v1286
    %v1288 = vtanh.pop %v1268
    %v1289 = vmul.f32 %v1287, %v1139
    %1291 = vrot.lane.b32.xlu0 %v1288, 64
    %v1292 = vpop.permute.xlu0 %1291
    %v1294 = vmul.f32 %v1287, %v1292
    %1296 = vrot.lane.b32.xlu0 %v1294, 32
    %v1297 = vpop.permute.xlu0 %1296
    %v1299 = vadd.f32 %v1289, %v1297
    %v1300 = vtanh.pop %v1299
    %1302 = vrot.lane.b32.xlu0 %v1300, 64
    %v1303 = vpop.permute.xlu0 %1302
    %v1305 = vmul.f32 %v1287, %v1303
    %1307 = vrot.lane.b32.xlu0 %v1305, 32
    %v1308 = vpop.permute.xlu0 %1307
    %s1310 = scalar_lea.vmem [#allocation4], 56
    %1311 = vst.msk [vmem:[%s1310] sm:$0xff] %vm32, %v1308
    %1312 = vst.msk [vmem:[#allocation2] sm:$0xff] %vm32, %v1308
    %1314 = vrot.lane.b32.xlu0 %v1299, 96
    %v1315 = vpop.permute.xlu0 %1314
    %1317 = vst.msk [vmem:[#allocation3] sm:$0xff] %vm32, %v1315
    // Predicated region
    $region22: #{att_forward.3} parent=1 // pred_check
      _
    $region23: #{att_forward.3} parent=1 // pred_check_branch
      %1319 = sbr.rel (0) target = $region25
    $region24: #{att_forward.3} parent=1 // pred_region
      %1321 = vsyncadd [#allocation5], 0
      %s1322 = sshll.u32 [#allocation4], 4
      %s1323 = int_to_ptr.vmem [resolvable:$true] %s1322
      %s1324 = sshll.u32 %s4, 4
      %s1325 = int_to_ptr.hbm [resolvable:$true] %s1324
      %1330 = dma.vmem_to_hbm [thread:$0]  %s1323, 1024, %s1325, [#allocation5], 128, 128, 8
    $region25: #{att_forward.3} parent=1 // pred_fallthru
      _
    // Predicated region
    $region26: #{att_forward.3} parent=1 // pred_check
      _
    $region27: #{att_forward.3} parent=1 // pred_check_branch
      %1332 = sbr.rel (0) target = $region29
    $region28: #{att_forward.3} parent=1 // pred_region
      %1334 = dma.done [#allocation5], 1024
    $region29: #{att_forward.3} parent=1 // pred_fallthru
      _
    %1335 = vsyncpa [#allocation5], 1

</llo_original>
